<compile_context>
chip_gen: v7x
topology: tpu7x:2x2x1
jax: 0.10.0
libtpu: 0.0.40
codegen_flags: <defaults>
</compile_context>

<pallas_src>
import functools

import jax
import jax.numpy as jnp
from jax import lax
from jax.experimental import pallas as pl
from jax.experimental.pallas import tpu as pltpu


def _decoder_layer_kernel(nhead, head_dim,
                          tgt_ref, tpos_ref, kpt_ref, vp_ref,
                          wq_ref, wo_ref, w1_ref, b1_ref, w2_ref, rows_ref,
                          out_ref):
    f32 = jnp.float32
    eps = 1e-5
    cd = wq_ref.dtype                        # MXU operand dtype (bf16 or f32)

    # Packed bias / gain rows (all (1, E)).
    bq = rows_ref[0:1, :]
    bo = rows_ref[1:2, :]
    g2 = rows_ref[2:3, :]
    be2 = rows_ref[3:4, :]
    b2 = rows_ref[4:5, :]
    g3 = rows_ref[5:6, :]
    be3 = rows_ref[6:7, :]

    tgt = tgt_ref[...].astype(f32)           # (TQ, E) residual input
    q_in = tgt + tpos_ref[...].astype(f32)   # fused positional add (VPU)

    # Query projection (1/sqrt(head_dim) already folded into wq/bq on host).
    qp = jnp.dot(q_in.astype(cd), wq_ref[...], preferred_element_type=f32) + bq
    qp = qp.astype(cd)                       # cast once, reused by every head

    kpt = kpt_ref[...]                       # (E, Lk)  already MXU dtype
    vp = vp_ref[...]                         # (Lk, E)  already MXU dtype

    # Per-head attention with static slices: head h owns rows/lanes
    # [h*head_dim, (h+1)*head_dim).  Plain 2-D MXU matmuls, f32 accumulation,
    # softmax math in f32, EUP approximate reciprocal for the denominator.
    head_outs = []
    for h in range(nhead):                   # static tiny loop
        lo = h * head_dim
        hi = lo + head_dim
        s = jnp.dot(qp[:, lo:hi], kpt[lo:hi, :],
                    preferred_element_type=f32)          # (TQ, Lk)
        s = s - jnp.max(s, axis=-1, keepdims=True)
        p = jnp.exp(s)
        p = p * pl.reciprocal(jnp.sum(p, axis=-1, keepdims=True), approx=True)
        head_outs.append(jnp.dot(p.astype(cd), vp[:, lo:hi],
                                 preferred_element_type=f32))   # (TQ, hd)
    attn = jnp.concatenate(head_outs, axis=-1)           # (TQ, E)

    attn = jnp.dot(attn.astype(cd), wo_ref[...],
                   preferred_element_type=f32) + bo      # out-projection

    def layer_norm(x, g, b):
        mu = jnp.mean(x, axis=-1, keepdims=True)
        var = jnp.mean((x - mu) ** 2, axis=-1, keepdims=True)
        return (x - mu) * lax.rsqrt(var + eps) * g + b

    # residual + LayerNorm2 (dropout2 = identity)
    x = layer_norm(tgt + attn, g2, be2)

    # FFN: linear1 -> ReLU -> linear2 (dropout = identity)
    h1 = jnp.maximum(
        jnp.dot(x.astype(cd), w1_ref[...], preferred_element_type=f32)
        + b1_ref[...], 0.0)
    y = jnp.dot(h1.astype(cd), w2_ref[...], preferred_element_type=f32) + b2

    # residual + LayerNorm3 (dropout3 = identity)
    out_ref[...] = layer_norm(x + y, g3, be3).astype(out_ref.dtype)


def _const_spec(shape):
    """BlockSpec for a resident (constant-index-map) input, single-buffered."""
    idx = lambda b, i: (0,) * len(shape)
    try:
        # index_map never changes -> a second pipeline buffer only wastes VMEM.
        return pl.BlockSpec(shape, idx, pipeline_mode=pl.Buffered(1))
    except Exception:                        # older jax without pipeline_mode
        return pl.BlockSpec(shape, idx)


def _vmem_cap_bytes():
    try:
        return int(pltpu.get_tpu_info().vmem_capacity_bytes)
    except Exception:
        return None


def _pick_tq(lq, tq_rows):
    """Largest multiple-of-8 query tile <= tq_rows that divides Lq."""
    if lq <= tq_rows:
        return lq
    best = None
    t = 8
    while t <= tq_rows:
        if lq % t == 0:
            best = t
        t += 8
    # Fallback: padded last block (stores are masked; every op is row-local so
    # padded rows never contaminate valid rows).
    return best if best is not None else tq_rows


def transformer_decoder_layer(tgt, left_memory, params, *, nhead,
                              left_pos=None, token_pos=None,
                              matmul_dtype=jnp.bfloat16, tq_rows=None):
    """tgt: (Lq, B, E); left_memory: (Lk, B, E). Returns (Lq, B, E)."""
    Lq, B, E = tgt.shape
    Lk = left_memory.shape[0]
    assert left_memory.shape == (Lk, B, E)
    assert E % nhead == 0
    head_dim = E // nhead

    f32 = jnp.float32
    cd = f32 if matmul_dtype is None else matmul_dtype
    scale = 1.0 / float(head_dim) ** 0.5

    tpos = token_pos if token_pos is not None else jnp.zeros_like(tgt)
    lpos = left_pos if left_pos is not None else jnp.zeros_like(left_memory)

    # Batch-major layout: one HBM transpose amortized over the whole grid, so
    # per-batch attention needs no block-diagonal masking inside the kernel.
    tgt_b = jnp.transpose(tgt, (1, 0, 2))             # (B, Lq, E)
    tpos_b = jnp.transpose(tpos, (1, 0, 2))           # (B, Lq, E)
    mem_b = jnp.transpose(left_memory, (1, 0, 2))     # (B, Lk, E)
    lpos_b = jnp.transpose(lpos, (1, 0, 2))           # (B, Lk, E)

    # Hoisted K / V projections: computed ONCE per call (not per query block).
    # PyTorch Linear stores (out, in) -> contract over the second weight dim.
    kp = jnp.einsum("ble,fe->blf", mem_b + lpos_b, params["wk"]) + params["bk"]
    vp = jnp.einsum("ble,fe->blf", mem_b, params["wv"]) + params["bv"]
    kpt = jnp.transpose(kp, (0, 2, 1)).astype(cd)     # (B, E, Lk) pre-transposed
    vp = vp.astype(cd)                                # (B, Lk, E)

    def row(x):
        return x.reshape(1, -1).astype(f32)

    # All (1, E) bias / gain vectors packed into one (8, E) VMEM input.
    rows = jnp.concatenate([
        row(params["bq"]) * scale, row(params["bo"]),
        row(params["g2"]), row(params["be2"]), row(params["b2"]),
        row(params["g3"]), row(params["be3"]),
        jnp.zeros((1, E), f32),
    ], axis=0)

    # 1/sqrt(head_dim) folded into the query projection (weights + bias).
    wq_t = (params["wq"].T * scale).astype(cd)
    wo_t = params["wo"].T.astype(cd)
    w1_t = params["w1"].T.astype(cd)
    w2_t = params["w2"].T.astype(cd)
    b1 = row(params["b1"])

    cap = _vmem_cap_bytes()
    if tq_rows is None:
        # 128 MiB chips (v5e/v6e) afford a taller query tile than v7x (64 MiB).
        tq_rows = 512 if (cap is not None and cap > 96 * 1024 * 1024) else 256
    tq = _pick_tq(Lq, tq_rows)
    grid = (B, pl.cdiv(Lq, tq))

    in_specs = [
        pl.BlockSpec((None, tq, E), lambda b, i: (b, i, 0)),   # tgt block
        pl.BlockSpec((None, tq, E), lambda b, i: (b, i, 0)),   # token_pos block
        pl.BlockSpec((None, E, Lk), lambda b, i: (b, 0, 0)),   # kp^T per batch
        pl.BlockSpec((None, Lk, E), lambda b, i: (b, 0, 0)),   # vp   per batch
        _const_spec(wq_t.shape), _const_spec(wo_t.shape),
        _const_spec(w1_t.shape), _const_spec(b1.shape),
        _const_spec(w2_t.shape), _const_spec(rows.shape),
    ]

    kernel = functools.partial(_decoder_layer_kernel, nhead, head_dim)
    out = pl.pallas_call(
        kernel,
        out_shape=jax.ShapeDtypeStruct((B, Lq, E), tgt.dtype),
        grid_spec=pltpu.PrefetchScalarGridSpec(
            num_scalar_prefetch=0,
            grid=grid,
            in_specs=in_specs,
            out_specs=pl.BlockSpec((None, tq, E), lambda b, i: (b, i, 0)),
        ),
        compiler_params=pltpu.CompilerParams(
            dimension_semantics=("parallel", "parallel"),
            vmem_limit_bytes=None if cap is None else int(cap * 0.8)),
    )(tgt_b, tpos_b, kpt, vp, wq_t, wo_t, w1_t, b1, w2_t, rows)

    return jnp.transpose(out, (1, 0, 2))              # back to (Lq, B, E)


def init_params(key, d_model, nhead, dim_ff):
    ks = jax.random.split(key, 12)
    s = 0.02
    f32 = jnp.float32
    return {
        "wq": s * jax.random.normal(ks[0], (d_model, d_model), f32),
        "wk": s * jax.random.normal(ks[1], (d_model, d_model), f32),
        "wv": s * jax.random.normal(ks[2], (d_model, d_model), f32),
        "bq": s * jax.random.normal(ks[3], (d_model,), f32),
        "bk": s * jax.random.normal(ks[4], (d_model,), f32),
        "bv": s * jax.random.normal(ks[5], (d_model,), f32),
        "wo": s * jax.random.normal(ks[6], (d_model, d_model), f32),
        "bo": s * jax.random.normal(ks[7], (d_model,), f32),
        "w1": s * jax.random.normal(ks[8], (dim_ff, d_model), f32),
        "b1": s * jax.random.normal(ks[9], (dim_ff,), f32),
        "w2": s * jax.random.normal(ks[10], (d_model, dim_ff), f32),
        "b2": s * jax.random.normal(ks[11], (d_model,), f32),
        "g2": jnp.ones((d_model,), f32),
        "be2": jnp.zeros((d_model,), f32),
        "g3": jnp.ones((d_model,), f32),
        "be3": jnp.zeros((d_model,), f32),
    }


def _reference(tgt, mem, params, nhead, left_pos, token_pos):
    """Pure-JAX (XLA) reference matching the PyTorch forward, for validation."""
    Lq, B, E = tgt.shape
    hd = E // nhead
    q = tgt + token_pos
    k = mem + left_pos
    v = mem

    def proj(x, w, b):
        return jnp.einsum("lbe,fe->lbf", x, w) + b

    qp = proj(q, params["wq"], params["bq"]).reshape(Lq, B, nhead, hd)
    kp = proj(k, params["wk"], params["bk"]).reshape(k.shape[0], B, nhead, hd)
    vp = proj(v, params["wv"], params["bv"]).reshape(v.shape[0], B, nhead, hd)
    s = jnp.einsum("qbhd,kbhd->bhqk", qp, kp) / jnp.sqrt(float(hd))
    p = jax.nn.softmax(s, axis=-1)
    o = jnp.einsum("bhqk,kbhd->qbhd", p, vp).reshape(Lq, B, E)
    attn = jnp.einsum("qbe,fe->qbf", o, params["wo"]) + params["bo"]

    def ln(x, g, b):
        mu = x.mean(-1, keepdims=True)
        var = ((x - mu) ** 2).mean(-1, keepdims=True)
        return (x - mu) / jnp.sqrt(var + 1e-5) * g + b

    x = ln(tgt + attn, params["g2"], params["be2"])
    h1 = jax.nn.relu(jnp.einsum("qbe,fe->qbf", x, params["w1"]) + params["b1"])
    y = jnp.einsum("qbf,ef->qbe", h1, params["w2"]) + params["b2"]
    return ln(x + y, params["g3"], params["be3"])


if __name__ == "__main__":
    d_model, nhead, dim_ff = 32, 4, 64
    Lq, Lk, B = 8, 16, 2

    key = jax.random.PRNGKey(0)
    ks = jax.random.split(key, 4)
    tgt = jax.random.normal(ks[0], (Lq, B, d_model), jnp.float32)
    left_memory = jax.random.normal(ks[1], (Lk, B, d_model), jnp.float32)
    token_pos = jax.random.normal(ks[2], (Lq, B, d_model), jnp.float32)
    left_pos = jax.random.normal(ks[3], (Lk, B, d_model), jnp.float32)

    params = init_params(jax.random.PRNGKey(42), d_model, nhead, dim_ff)
    ref = _reference(tgt, left_memory, params, nhead, left_pos, token_pos)

    # f32 MXU operands: PyTorch-matching numerics (modulo approx softmax recip).
    out_f32 = transformer_decoder_layer(tgt, left_memory, params, nhead=nhead,
                                        left_pos=left_pos, token_pos=token_pos,
                                        matmul_dtype=jnp.float32)
    out_f32 = jax.block_until_ready(out_f32)
    assert out_f32.shape == (Lq, B, d_model)
    assert bool(jnp.all(jnp.isfinite(out_f32)))
    err_f32 = float(jnp.max(jnp.abs(out_f32 - ref)))
    assert err_f32 < 5e-3, err_f32

    # Default bf16 MXU operands (recommended on v5e/v6e/v7x), f32 accumulation.
    out_bf16 = transformer_decoder_layer(tgt, left_memory, params, nhead=nhead,
                                         left_pos=left_pos, token_pos=token_pos)
    out_bf16 = jax.block_until_ready(out_bf16)
    assert out_bf16.shape == (Lq, B, d_model)
    err_bf16 = float(jnp.max(jnp.abs(out_bf16 - ref)))
    assert err_bf16 < 5e-2, err_bf16

    print("KERNEL_OK")
</pallas_src>

<mosaic_0001>
module attributes {stable_mosaic.version = 11 : i64} {
  func.func @_decoder_layer_kernel(%arg0: i32, %arg1: i32, %arg2: memref<1x8x32xf32, #tpu.memory_space<vmem>>, %arg3: memref<1x8x32xf32, #tpu.memory_space<vmem>>, %arg4: memref<1x32x16xf32, #tpu.memory_space<vmem>>, %arg5: memref<1x16x32xf32, #tpu.memory_space<vmem>>, %arg6: memref<32x32xf32, #tpu.memory_space<vmem>>, %arg7: memref<32x32xf32, #tpu.memory_space<vmem>>, %arg8: memref<32x64xf32, #tpu.memory_space<vmem>>, %arg9: memref<1x64xf32, #tpu.memory_space<vmem>>, %arg10: memref<64x32xf32, #tpu.memory_space<vmem>>, %arg11: memref<8x32xf32, #tpu.memory_space<vmem>>, %arg12: memref<1x8x32xf32, #tpu.memory_space<vmem>>) attributes {dimension_semantics = [#tpu.dimension_semantics<parallel>, #tpu.dimension_semantics<parallel>], iteration_bounds = array<i64: 2, 1>, scalar_prefetch = 0 : i64, scratch_operands = 0 : i64, tpu.core_type = #tpu.core_type<tc>, window_params = [{transform_indices = @transform_0, window_bounds = array<i64: 1, 8, 32>}, {transform_indices = @transform_1, window_bounds = array<i64: 1, 8, 32>}, {transform_indices = @transform_2, window_bounds = array<i64: 1, 32, 16>}, {transform_indices = @transform_3, window_bounds = array<i64: 1, 16, 32>}, {pipeline_mode = #tpu.pipeline_mode<synchronous>, transform_indices = @transform_4, window_bounds = array<i64: 32, 32>}, {pipeline_mode = #tpu.pipeline_mode<synchronous>, transform_indices = @transform_5, window_bounds = array<i64: 32, 32>}, {pipeline_mode = #tpu.pipeline_mode<synchronous>, transform_indices = @transform_6, window_bounds = array<i64: 32, 64>}, {pipeline_mode = #tpu.pipeline_mode<synchronous>, transform_indices = @transform_7, window_bounds = array<i64: 1, 64>}, {pipeline_mode = #tpu.pipeline_mode<synchronous>, transform_indices = @transform_8, window_bounds = array<i64: 64, 32>}, {pipeline_mode = #tpu.pipeline_mode<synchronous>, transform_indices = @transform_9, window_bounds = array<i64: 8, 32>}, {transform_indices = @transform_10, window_bounds = array<i64: 1, 8, 32>}]} {
    %c0 = arith.constant 0 : index
    %c0_0 = arith.constant 0 : index
    %0 = vector.load %arg11[%c0, %c0_0] : memref<8x32xf32, #tpu.memory_space<vmem>>, vector<1x32xf32>
    %c1 = arith.constant 1 : index
    %c0_1 = arith.constant 0 : index
    %1 = vector.load %arg11[%c1, %c0_1] : memref<8x32xf32, #tpu.memory_space<vmem>>, vector<1x32xf32>
    %c2 = arith.constant 2 : index
    %c0_2 = arith.constant 0 : index
    %2 = vector.load %arg11[%c2, %c0_2] : memref<8x32xf32, #tpu.memory_space<vmem>>, vector<1x32xf32>
    %c3 = arith.constant 3 : index
    %c0_3 = arith.constant 0 : index
    %3 = vector.load %arg11[%c3, %c0_3] : memref<8x32xf32, #tpu.memory_space<vmem>>, vector<1x32xf32>
    %c4 = arith.constant 4 : index
    %c0_4 = arith.constant 0 : index
    %4 = vector.load %arg11[%c4, %c0_4] : memref<8x32xf32, #tpu.memory_space<vmem>>, vector<1x32xf32>
    %c5 = arith.constant 5 : index
    %c0_5 = arith.constant 0 : index
    %5 = vector.load %arg11[%c5, %c0_5] : memref<8x32xf32, #tpu.memory_space<vmem>>, vector<1x32xf32>
    %c6 = arith.constant 6 : index
    %c0_6 = arith.constant 0 : index
    %6 = vector.load %arg11[%c6, %c0_6] : memref<8x32xf32, #tpu.memory_space<vmem>>, vector<1x32xf32>
    %c0_7 = arith.constant 0 : index
    %c0_8 = arith.constant 0 : index
    %c0_9 = arith.constant 0 : index
    %7 = vector.load %arg2[%c0_7, %c0_8, %c0_9] : memref<1x8x32xf32, #tpu.memory_space<vmem>>, vector<1x8x32xf32>
    %8 = vector.shape_cast %7 : vector<1x8x32xf32> to vector<8x32xf32>
    %c0_10 = arith.constant 0 : index
    %c0_11 = arith.constant 0 : index
    %c0_12 = arith.constant 0 : index
    %9 = vector.load %arg3[%c0_10, %c0_11, %c0_12] : memref<1x8x32xf32, #tpu.memory_space<vmem>>, vector<1x8x32xf32>
    %10 = vector.shape_cast %9 : vector<1x8x32xf32> to vector<8x32xf32>
    %11 = arith.addf %8, %10 : vector<8x32xf32>
    %c0_13 = arith.constant 0 : index
    %c0_14 = arith.constant 0 : index
    %12 = vector.load %arg6[%c0_13, %c0_14] : memref<32x32xf32, #tpu.memory_space<vmem>>, vector<32x32xf32>
    %cst = arith.constant dense<0.000000e+00> : vector<8x32xf32>
    %13 = tpu.matmul %11, %12, %cst {dimension_numbers = #tpu.dot_dimension_numbers<[1], [0], [0], [1], [0, 0, 1, 1], [], []>} : vector<8x32xf32>, vector<32x32xf32>, vector<8x32xf32> -> vector<8x32xf32>
    %14 = vector.broadcast %0 : vector<1x32xf32> to vector<8x32xf32>
    %15 = arith.addf %13, %14 : vector<8x32xf32>
    %c0_15 = arith.constant 0 : index
    %c0_16 = arith.constant 0 : index
    %c0_17 = arith.constant 0 : index
    %16 = vector.load %arg4[%c0_15, %c0_16, %c0_17] : memref<1x32x16xf32, #tpu.memory_space<vmem>>, vector<1x32x16xf32>
    %17 = vector.shape_cast %16 : vector<1x32x16xf32> to vector<32x16xf32>
    %c0_18 = arith.constant 0 : index
    %c0_19 = arith.constant 0 : index
    %c0_20 = arith.constant 0 : index
    %18 = vector.load %arg5[%c0_18, %c0_19, %c0_20] : memref<1x16x32xf32, #tpu.memory_space<vmem>>, vector<1x16x32xf32>
    %19 = vector.shape_cast %18 : vector<1x16x32xf32> to vector<16x32xf32>
    %20 = vector.extract_strided_slice %15 {offsets = [0, 0], sizes = [8, 8], strides = [1, 1]} : vector<8x32xf32> to vector<8x8xf32>
    %21 = vector.extract_strided_slice %17 {offsets = [0, 0], sizes = [8, 16], strides = [1, 1]} : vector<32x16xf32> to vector<8x16xf32>
    %cst_21 = arith.constant dense<0.000000e+00> : vector<8x16xf32>
    %22 = tpu.matmul %20, %21, %cst_21 {dimension_numbers = #tpu.dot_dimension_numbers<[1], [0], [0], [1], [0, 0, 1, 1], [], []>} : vector<8x8xf32>, vector<8x16xf32>, vector<8x16xf32> -> vector<8x16xf32>
    %cst_22 = arith.constant dense<0xFF800000> : vector<8xf32>
    %23 = vector.multi_reduction <maximumf>, %22, %cst_22 [1] : vector<8x16xf32> to vector<8xf32>
    %24 = vector.shape_cast %23 : vector<8xf32> to vector<8x1xf32>
    %25 = vector.broadcast %24 : vector<8x1xf32> to vector<8x16xf32>
    %26 = arith.subf %22, %25 : vector<8x16xf32>
    %27 = math.exp %26 : vector<8x16xf32>
    %cst_23 = arith.constant dense<0.000000e+00> : vector<8xf32>
    %28 = vector.multi_reduction <add>, %27, %cst_23 [1] : vector<8x16xf32> to vector<8xf32>
    %29 = vector.shape_cast %28 : vector<8xf32> to vector<8x1xf32>
    %30 = tpu.reciprocal %29 {approx = true} : vector<8x1xf32> -> vector<8x1xf32>
    %31 = vector.broadcast %30 : vector<8x1xf32> to vector<8x16xf32>
    %32 = arith.mulf %27, %31 : vector<8x16xf32>
    %33 = vector.extract_strided_slice %19 {offsets = [0, 0], sizes = [16, 8], strides = [1, 1]} : vector<16x32xf32> to vector<16x8xf32>
    %cst_24 = arith.constant dense<0.000000e+00> : vector<8x8xf32>
    %34 = tpu.matmul %32, %33, %cst_24 {dimension_numbers = #tpu.dot_dimension_numbers<[1], [0], [0], [1], [0, 0, 1, 1], [], []>} : vector<8x16xf32>, vector<16x8xf32>, vector<8x8xf32> -> vector<8x8xf32>
    %35 = vector.extract_strided_slice %15 {offsets = [0, 8], sizes = [8, 8], strides = [1, 1]} : vector<8x32xf32> to vector<8x8xf32>
    %36 = vector.extract_strided_slice %17 {offsets = [8, 0], sizes = [8, 16], strides = [1, 1]} : vector<32x16xf32> to vector<8x16xf32>
    %cst_25 = arith.constant dense<0.000000e+00> : vector<8x16xf32>
    %37 = tpu.matmul %35, %36, %cst_25 {dimension_numbers = #tpu.dot_dimension_numbers<[1], [0], [0], [1], [0, 0, 1, 1], [], []>} : vector<8x8xf32>, vector<8x16xf32>, vector<8x16xf32> -> vector<8x16xf32>
    %cst_26 = arith.constant dense<0xFF800000> : vector<8xf32>
    %38 = vector.multi_reduction <maximumf>, %37, %cst_26 [1] : vector<8x16xf32> to vector<8xf32>
    %39 = vector.shape_cast %38 : vector<8xf32> to vector<8x1xf32>
    %40 = vector.broadcast %39 : vector<8x1xf32> to vector<8x16xf32>
    %41 = arith.subf %37, %40 : vector<8x16xf32>
    %42 = math.exp %41 : vector<8x16xf32>
    %cst_27 = arith.constant dense<0.000000e+00> : vector<8xf32>
    %43 = vector.multi_reduction <add>, %42, %cst_27 [1] : vector<8x16xf32> to vector<8xf32>
    %44 = vector.shape_cast %43 : vector<8xf32> to vector<8x1xf32>
    %45 = tpu.reciprocal %44 {approx = true} : vector<8x1xf32> -> vector<8x1xf32>
    %46 = vector.broadcast %45 : vector<8x1xf32> to vector<8x16xf32>
    %47 = arith.mulf %42, %46 : vector<8x16xf32>
    %48 = vector.extract_strided_slice %19 {offsets = [0, 8], sizes = [16, 8], strides = [1, 1]} : vector<16x32xf32> to vector<16x8xf32>
    %cst_28 = arith.constant dense<0.000000e+00> : vector<8x8xf32>
    %49 = tpu.matmul %47, %48, %cst_28 {dimension_numbers = #tpu.dot_dimension_numbers<[1], [0], [0], [1], [0, 0, 1, 1], [], []>} : vector<8x16xf32>, vector<16x8xf32>, vector<8x8xf32> -> vector<8x8xf32>
    %50 = vector.extract_strided_slice %15 {offsets = [0, 16], sizes = [8, 8], strides = [1, 1]} : vector<8x32xf32> to vector<8x8xf32>
    %51 = vector.extract_strided_slice %17 {offsets = [16, 0], sizes = [8, 16], strides = [1, 1]} : vector<32x16xf32> to vector<8x16xf32>
    %cst_29 = arith.constant dense<0.000000e+00> : vector<8x16xf32>
    %52 = tpu.matmul %50, %51, %cst_29 {dimension_numbers = #tpu.dot_dimension_numbers<[1], [0], [0], [1], [0, 0, 1, 1], [], []>} : vector<8x8xf32>, vector<8x16xf32>, vector<8x16xf32> -> vector<8x16xf32>
    %cst_30 = arith.constant dense<0xFF800000> : vector<8xf32>
    %53 = vector.multi_reduction <maximumf>, %52, %cst_30 [1] : vector<8x16xf32> to vector<8xf32>
    %54 = vector.shape_cast %53 : vector<8xf32> to vector<8x1xf32>
    %55 = vector.broadcast %54 : vector<8x1xf32> to vector<8x16xf32>
    %56 = arith.subf %52, %55 : vector<8x16xf32>
    %57 = math.exp %56 : vector<8x16xf32>
    %cst_31 = arith.constant dense<0.000000e+00> : vector<8xf32>
    %58 = vector.multi_reduction <add>, %57, %cst_31 [1] : vector<8x16xf32> to vector<8xf32>
    %59 = vector.shape_cast %58 : vector<8xf32> to vector<8x1xf32>
    %60 = tpu.reciprocal %59 {approx = true} : vector<8x1xf32> -> vector<8x1xf32>
    %61 = vector.broadcast %60 : vector<8x1xf32> to vector<8x16xf32>
    %62 = arith.mulf %57, %61 : vector<8x16xf32>
    %63 = vector.extract_strided_slice %19 {offsets = [0, 16], sizes = [16, 8], strides = [1, 1]} : vector<16x32xf32> to vector<16x8xf32>
    %cst_32 = arith.constant dense<0.000000e+00> : vector<8x8xf32>
    %64 = tpu.matmul %62, %63, %cst_32 {dimension_numbers = #tpu.dot_dimension_numbers<[1], [0], [0], [1], [0, 0, 1, 1], [], []>} : vector<8x16xf32>, vector<16x8xf32>, vector<8x8xf32> -> vector<8x8xf32>
    %65 = vector.extract_strided_slice %15 {offsets = [0, 24], sizes = [8, 8], strides = [1, 1]} : vector<8x32xf32> to vector<8x8xf32>
    %66 = vector.extract_strided_slice %17 {offsets = [24, 0], sizes = [8, 16], strides = [1, 1]} : vector<32x16xf32> to vector<8x16xf32>
    %cst_33 = arith.constant dense<0.000000e+00> : vector<8x16xf32>
    %67 = tpu.matmul %65, %66, %cst_33 {dimension_numbers = #tpu.dot_dimension_numbers<[1], [0], [0], [1], [0, 0, 1, 1], [], []>} : vector<8x8xf32>, vector<8x16xf32>, vector<8x16xf32> -> vector<8x16xf32>
    %cst_34 = arith.constant dense<0xFF800000> : vector<8xf32>
    %68 = vector.multi_reduction <maximumf>, %67, %cst_34 [1] : vector<8x16xf32> to vector<8xf32>
    %69 = vector.shape_cast %68 : vector<8xf32> to vector<8x1xf32>
    %70 = vector.broadcast %69 : vector<8x1xf32> to vector<8x16xf32>
    %71 = arith.subf %67, %70 : vector<8x16xf32>
    %72 = math.exp %71 : vector<8x16xf32>
    %cst_35 = arith.constant dense<0.000000e+00> : vector<8xf32>
    %73 = vector.multi_reduction <add>, %72, %cst_35 [1] : vector<8x16xf32> to vector<8xf32>
    %74 = vector.shape_cast %73 : vector<8xf32> to vector<8x1xf32>
    %75 = tpu.reciprocal %74 {approx = true} : vector<8x1xf32> -> vector<8x1xf32>
    %76 = vector.broadcast %75 : vector<8x1xf32> to vector<8x16xf32>
    %77 = arith.mulf %72, %76 : vector<8x16xf32>
    %78 = vector.extract_strided_slice %19 {offsets = [0, 24], sizes = [16, 8], strides = [1, 1]} : vector<16x32xf32> to vector<16x8xf32>
    %cst_36 = arith.constant dense<0.000000e+00> : vector<8x8xf32>
    %79 = tpu.matmul %77, %78, %cst_36 {dimension_numbers = #tpu.dot_dimension_numbers<[1], [0], [0], [1], [0, 0, 1, 1], [], []>} : vector<8x16xf32>, vector<16x8xf32>, vector<8x8xf32> -> vector<8x8xf32>
    %80 = tpu.concatenate %34, %49, %64, %79 in 1 : vector<8x8xf32>, vector<8x8xf32>, vector<8x8xf32>, vector<8x8xf32> -> vector<8x32xf32>
    %c0_37 = arith.constant 0 : index
    %c0_38 = arith.constant 0 : index
    %81 = vector.load %arg7[%c0_37, %c0_38] : memref<32x32xf32, #tpu.memory_space<vmem>>, vector<32x32xf32>
    %cst_39 = arith.constant dense<0.000000e+00> : vector<8x32xf32>
    %82 = tpu.matmul %80, %81, %cst_39 {dimension_numbers = #tpu.dot_dimension_numbers<[1], [0], [0], [1], [0, 0, 1, 1], [], []>} : vector<8x32xf32>, vector<32x32xf32>, vector<8x32xf32> -> vector<8x32xf32>
    %83 = vector.broadcast %1 : vector<1x32xf32> to vector<8x32xf32>
    %84 = arith.addf %82, %83 : vector<8x32xf32>
    %85 = arith.addf %8, %84 : vector<8x32xf32>
    %cst_40 = arith.constant dense<0.000000e+00> : vector<8xf32>
    %86 = vector.multi_reduction <add>, %85, %cst_40 [1] : vector<8x32xf32> to vector<8xf32>
    %87 = vector.shape_cast %86 : vector<8xf32> to vector<8x1xf32>
    %cst_41 = arith.constant 3.200000e+01 : f32
    %88 = vector.broadcast %cst_41 : f32 to vector<8x1xf32>
    %89 = arith.divf %87, %88 : vector<8x1xf32>
    %90 = vector.broadcast %89 : vector<8x1xf32> to vector<8x32xf32>
    %91 = arith.subf %85, %90 : vector<8x32xf32>
    %92 = arith.mulf %91, %91 : vector<8x32xf32>
    %cst_42 = arith.constant dense<0.000000e+00> : vector<8xf32>
    %93 = vector.multi_reduction <add>, %92, %cst_42 [1] : vector<8x32xf32> to vector<8xf32>
    %94 = vector.shape_cast %93 : vector<8xf32> to vector<8x1xf32>
    %cst_43 = arith.constant 3.200000e+01 : f32
    %95 = vector.broadcast %cst_43 : f32 to vector<8x1xf32>
    %96 = arith.divf %94, %95 : vector<8x1xf32>
    %97 = vector.broadcast %89 : vector<8x1xf32> to vector<8x32xf32>
    %98 = arith.subf %85, %97 : vector<8x32xf32>
    %cst_44 = arith.constant 9.99999974E-6 : f32
    %99 = vector.broadcast %cst_44 : f32 to vector<8x1xf32>
    %100 = arith.addf %96, %99 : vector<8x1xf32>
    %101 = math.rsqrt %100 : vector<8x1xf32>
    %102 = vector.broadcast %101 : vector<8x1xf32> to vector<8x32xf32>
    %103 = arith.mulf %98, %102 : vector<8x32xf32>
    %104 = vector.broadcast %2 : vector<1x32xf32> to vector<8x32xf32>
    %105 = arith.mulf %103, %104 : vector<8x32xf32>
    %106 = vector.broadcast %3 : vector<1x32xf32> to vector<8x32xf32>
    %107 = arith.addf %105, %106 : vector<8x32xf32>
    %c0_45 = arith.constant 0 : index
    %c0_46 = arith.constant 0 : index
    %108 = vector.load %arg8[%c0_45, %c0_46] : memref<32x64xf32, #tpu.memory_space<vmem>>, vector<32x64xf32>
    %cst_47 = arith.constant dense<0.000000e+00> : vector<8x64xf32>
    %109 = tpu.matmul %107, %108, %cst_47 {dimension_numbers = #tpu.dot_dimension_numbers<[1], [0], [0], [1], [0, 0, 1, 1], [], []>} : vector<8x32xf32>, vector<32x64xf32>, vector<8x64xf32> -> vector<8x64xf32>
    %c0_48 = arith.constant 0 : index
    %c0_49 = arith.constant 0 : index
    %110 = vector.load %arg9[%c0_48, %c0_49] : memref<1x64xf32, #tpu.memory_space<vmem>>, vector<1x64xf32>
    %111 = vector.broadcast %110 : vector<1x64xf32> to vector<8x64xf32>
    %112 = arith.addf %109, %111 : vector<8x64xf32>
    %cst_50 = arith.constant 0.000000e+00 : f32
    %113 = vector.broadcast %cst_50 : f32 to vector<8x64xf32>
    %114 = arith.maximumf %112, %113 : vector<8x64xf32>
    %c0_51 = arith.constant 0 : index
    %c0_52 = arith.constant 0 : index
    %115 = vector.load %arg10[%c0_51, %c0_52] : memref<64x32xf32, #tpu.memory_space<vmem>>, vector<64x32xf32>
    %cst_53 = arith.constant dense<0.000000e+00> : vector<8x32xf32>
    %116 = tpu.matmul %114, %115, %cst_53 {dimension_numbers = #tpu.dot_dimension_numbers<[1], [0], [0], [1], [0, 0, 1, 1], [], []>} : vector<8x64xf32>, vector<64x32xf32>, vector<8x32xf32> -> vector<8x32xf32>
    %117 = vector.broadcast %4 : vector<1x32xf32> to vector<8x32xf32>
    %118 = arith.addf %116, %117 : vector<8x32xf32>
    %119 = arith.addf %107, %118 : vector<8x32xf32>
    %cst_54 = arith.constant dense<0.000000e+00> : vector<8xf32>
    %120 = vector.multi_reduction <add>, %119, %cst_54 [1] : vector<8x32xf32> to vector<8xf32>
    %121 = vector.shape_cast %120 : vector<8xf32> to vector<8x1xf32>
    %cst_55 = arith.constant 3.200000e+01 : f32
    %122 = vector.broadcast %cst_55 : f32 to vector<8x1xf32>
    %123 = arith.divf %121, %122 : vector<8x1xf32>
    %124 = vector.broadcast %123 : vector<8x1xf32> to vector<8x32xf32>
    %125 = arith.subf %119, %124 : vector<8x32xf32>
    %126 = arith.mulf %125, %125 : vector<8x32xf32>
    %cst_56 = arith.constant dense<0.000000e+00> : vector<8xf32>
    %127 = vector.multi_reduction <add>, %126, %cst_56 [1] : vector<8x32xf32> to vector<8xf32>
    %128 = vector.shape_cast %127 : vector<8xf32> to vector<8x1xf32>
    %cst_57 = arith.constant 3.200000e+01 : f32
    %129 = vector.broadcast %cst_57 : f32 to vector<8x1xf32>
    %130 = arith.divf %128, %129 : vector<8x1xf32>
    %131 = vector.broadcast %123 : vector<8x1xf32> to vector<8x32xf32>
    %132 = arith.subf %119, %131 : vector<8x32xf32>
    %cst_58 = arith.constant 9.99999974E-6 : f32
    %133 = vector.broadcast %cst_58 : f32 to vector<8x1xf32>
    %134 = arith.addf %130, %133 : vector<8x1xf32>
    %135 = math.rsqrt %134 : vector<8x1xf32>
    %136 = vector.broadcast %135 : vector<8x1xf32> to vector<8x32xf32>
    %137 = arith.mulf %132, %136 : vector<8x32xf32>
    %138 = vector.broadcast %5 : vector<1x32xf32> to vector<8x32xf32>
    %139 = arith.mulf %137, %138 : vector<8x32xf32>
    %140 = vector.broadcast %6 : vector<1x32xf32> to vector<8x32xf32>
    %141 = arith.addf %139, %140 : vector<8x32xf32>
    %c0_59 = arith.constant 0 : index
    %c0_60 = arith.constant 0 : index
    %c0_61 = arith.constant 0 : index
    %142 = vector.load %arg12[%c0_59, %c0_60, %c0_61] : memref<1x8x32xf32, #tpu.memory_space<vmem>>, vector<1x8x32xf32>
    %143 = vector.shape_cast %142 : vector<1x8x32xf32> to vector<8x32xf32>
    %144 = vector.shape_cast %141 : vector<8x32xf32> to vector<1x8x32xf32>
    tpu.vector_store %arg12[%c0_59, %c0_60, %c0_61], %144 {strides = array<i32>} : memref<1x8x32xf32, #tpu.memory_space<vmem>>, vector<1x8x32xf32>,
    return
  }
  func.func @transform_0(%arg0: i32, %arg1: i32) -> (i32, i32, i32) {
    %c0_i32 = arith.constant 0 : i32
    %c0_i32_0 = arith.constant 0 : i32
    return %arg0, %arg1, %c0_i32 : i32, i32, i32
  }
  func.func @transform_1(%arg0: i32, %arg1: i32) -> (i32, i32, i32) {
    %c0_i32 = arith.constant 0 : i32
    %c0_i32_0 = arith.constant 0 : i32
    return %arg0, %arg1, %c0_i32 : i32, i32, i32
  }
  func.func @transform_2(%arg0: i32, %arg1: i32) -> (i32, i32, i32) {
    %c0_i32 = arith.constant 0 : i32
    %c0_i32_0 = arith.constant 0 : i32
    %c0_i32_1 = arith.constant 0 : i32
    return %arg0, %c0_i32, %c0_i32_0 : i32, i32, i32
  }
  func.func @transform_3(%arg0: i32, %arg1: i32) -> (i32, i32, i32) {
    %c0_i32 = arith.constant 0 : i32
    %c0_i32_0 = arith.constant 0 : i32
    %c0_i32_1 = arith.constant 0 : i32
    return %arg0, %c0_i32, %c0_i32_0 : i32, i32, i32
  }
  func.func @transform_4(%arg0: i32, %arg1: i32) -> (i32, i32) {
    %c0_i32 = arith.constant 0 : i32
    %c0_i32_0 = arith.constant 0 : i32
    %c0_i32_1 = arith.constant 0 : i32
    return %c0_i32, %c0_i32_0 : i32, i32
  }
  func.func @transform_5(%arg0: i32, %arg1: i32) -> (i32, i32) {
    %c0_i32 = arith.constant 0 : i32
    %c0_i32_0 = arith.constant 0 : i32
    %c0_i32_1 = arith.constant 0 : i32
    return %c0_i32, %c0_i32_0 : i32, i32
  }
  func.func @transform_6(%arg0: i32, %arg1: i32) -> (i32, i32) {
    %c0_i32 = arith.constant 0 : i32
    %c0_i32_0 = arith.constant 0 : i32
    %c0_i32_1 = arith.constant 0 : i32
    return %c0_i32, %c0_i32_0 : i32, i32
  }
  func.func @transform_7(%arg0: i32, %arg1: i32) -> (i32, i32) {
    %c0_i32 = arith.constant 0 : i32
    %c0_i32_0 = arith.constant 0 : i32
    %c0_i32_1 = arith.constant 0 : i32
    return %c0_i32, %c0_i32_0 : i32, i32
  }
  func.func @transform_8(%arg0: i32, %arg1: i32) -> (i32, i32) {
    %c0_i32 = arith.constant 0 : i32
    %c0_i32_0 = arith.constant 0 : i32
    %c0_i32_1 = arith.constant 0 : i32
    return %c0_i32, %c0_i32_0 : i32, i32
  }
  func.func @transform_9(%arg0: i32, %arg1: i32) -> (i32, i32) {
    %c0_i32 = arith.constant 0 : i32
    %c0_i32_0 = arith.constant 0 : i32
    %c0_i32_1 = arith.constant 0 : i32
    return %c0_i32, %c0_i32_0 : i32, i32
  }
  func.func @transform_10(%arg0: i32, %arg1: i32) -> (i32, i32, i32) {
    %c0_i32 = arith.constant 0 : i32
    %c0_i32_0 = arith.constant 0 : i32
    return %arg0, %arg1, %c0_i32 : i32, i32, i32
  }
}

</mosaic_0001>

<llo_original>
// kernel: tpu_custom_call.1
$region0: #{tpu_custom_call.1}
  #allocation0 [shape = 'u32[]', space=smem, size = 0x4, offset = 0x4, fixed_abs, tag = 'smem constant byte address 0x4 - core index']
  #allocation1 [shape = 'u32[144,128]{1,0:T(1,128)}', space=vmem, size = 0x12000, scoped, tag = 'internal scratch']
  %s0 = inlined_call_operand.vmem [shape: f32[2,8,32], index: 0, kind: input, shape index: {}]
  %s1 = inlined_call_operand.vmem [shape: f32[2,8,32], index: 1, kind: input, shape index: {}]
  %s2 = inlined_call_operand.vmem [shape: f32[2,32,16], index: 2, kind: input, shape index: {}]
  %s3 = inlined_call_operand.vmem [shape: f32[2,16,32], index: 3, kind: input, shape index: {}]
  %s4 = inlined_call_operand.vmem [shape: f32[32,32], index: 4, kind: input, shape index: {}]
  %s5 = inlined_call_operand.vmem [shape: f32[32,32], index: 5, kind: input, shape index: {}]
  %s6 = inlined_call_operand.vmem [shape: f32[32,64], index: 6, kind: input, shape index: {}]
  %s7 = inlined_call_operand.vmem [shape: f32[1,64], index: 7, kind: input, shape index: {}]
  %s8 = inlined_call_operand.vmem [shape: f32[64,32], index: 8, kind: input, shape index: {}]
  %s9 = inlined_call_operand.vmem [shape: f32[8,32], index: 9, kind: input, shape index: {}]
  %s10 = inlined_call_operand.hbm [shape: f32[2,8,32], index: 10, kind: output, shape index: {}]
  %s11 = sld [smem:[#allocation0]]
  $region73: #{tpu_custom_call.1} parent=0
    _
  %s13 = ssub.s32 1, %s11
  %s14 = scalar_select 0, %s13, %s11
  $region1: #{tpu_custom_call.1} parent=0
    #allocation2 [shape = 'u8[8192]{0}', space=vmem, size = 0x2000, scoped, tag = 'output window, operand 0']
    #allocation3 [shape = 's32[2]{0}', space=sflag, size = 0x8, scoped, tag = 'scoped memory for tpu_custom_call.1']
    %15 = vsyncpa [#allocation3], 0
    %s16 = scalar_lea.sflag [#allocation3], 1
    %17 = vsyncpa %s16, 0
    loop: start=0, step=1, limit=4
    $region2: #{tpu_custom_call.1} parent=1 // loop_pre_header
      _
    $region3: #{tpu_custom_call.1} parent=1 // loop_header
      %s19 = sphi 0, %s23
      %p20 = scmp.ge.s32.totalorder %s19, 4
      %s26 = sphi 0, %s38
      %s27 = sphi 0, %s34
      %s28 = sphi 0, %s26
      %s29 = sphi 0, %s27
      %s30 = sphi 0, %s28
      %s31 = sphi 0, %s29
      %s43 = sphi 0, %s45
      %s46 = sphi 0, %s43
      %s47 = sphi 0, %s46
      %s63 = sphi 0, %s47
      %s71 = sphi 0, %s73
      %s74 = sphi 0, %s71
      %s75 = sphi 0, %s74
      %s91 = sphi 0, %s75
      %s97 = sphi 0, %s99
      %s100 = sphi 0, %s97
      %s101 = sphi 0, %s100
      %s117 = sphi 0, %s101
      %s123 = sphi 0, %s125
      %s126 = sphi 0, %s123
      %s127 = sphi 0, %s126
      %s143 = sphi 0, %s127
      %s147 = sphi 0, %s147
      %s149 = sphi 0, %s147
      %s150 = sphi 0, %s149
      %s164 = sphi 0, %s150
      %s168 = sphi 0, %s168
      %s170 = sphi 0, %s168
      %s171 = sphi 0, %s170
      %s185 = sphi 0, %s171
      %s189 = sphi 0, %s189
      %s191 = sphi 0, %s189
      %s192 = sphi 0, %s191
      %s206 = sphi 0, %s192
      %s210 = sphi 0, %s210
      %s212 = sphi 0, %s210
      %s213 = sphi 0, %s212
      %s227 = sphi 0, %s213
      %s231 = sphi 0, %s231
      %s233 = sphi 0, %s231
      %s234 = sphi 0, %s233
      %s248 = sphi 0, %s234
      %s252 = sphi 0, %s252
      %s254 = sphi 0, %s252
      %s255 = sphi 0, %s254
      %s269 = sphi 0, %s255
      %s277 = sphi 0, %s279
      %s280 = sphi 0, %s277
      %s281 = sphi 0, %s280
      %s297 = sphi 0, %s281
    $region4: #{tpu_custom_call.1} parent=1 // loop_header_branch
      %22 = sbr.rel (%p20) target = $region8
    $region5: #{tpu_custom_call.1} parent=1 // loop_body
      %s24 = ssub.s32 %s19, 1
      %s25 = ssub.s32 %s19, 2
      %s32 = sadd.s32 1, %s27
      %p33 = scmp.ge.s32.totalorder %s32, 1
      %s34 = scalar_select %p33, 0, %s32
      %s35 = sadd.s32 1, %s26
      %s36 = scalar_select %p33, %s35, %s26
      %p37 = scmp.ge.s32.totalorder %s36, 2
      %s38 = scalar_select %p37, 0, %s36
      %s39 = ssub.s32 %s26, %s38
      %s40 = ssub.s32 %s27, %s34
      %s41 = sor.u32 %s39, %s40
      %p42 = scmp.eq.s32.totalorder %s41, 0
      %s44 = sadd.s32 %s43, 1
      %s45 = scalar_select %p42, %s43, %s44
      %p48 = pneg %p42
      %p49 = scmp.eq.s32.totalorder %s19, 1
      %p50 = por %p48, %p49
      %p51 = scmp.ne.s32.totalorder %s43, %s46
      %p52 = scmp.eq.s32.totalorder %s19, 0
      %p53 = por %p51, %p52
      %p54 = scmp.ne.s32.totalorder %s43, %s46
      %p55 = scmp.eq.s32.totalorder %s24, 1
      %p56 = por %p54, %p55
      %p57 = scmp.ne.s32.totalorder %s46, %s47
      %p58 = scmp.eq.s32.totalorder %s24, 0
      %p59 = por %p57, %p58
      %p60 = scmp.ne.s32.totalorder %s46, %s47
      %p61 = scmp.eq.s32.totalorder %s25, 1
      %p62 = por %p60, %p61
      %p64 = scmp.ne.s32.totalorder %s47, %s63
      %p65 = scmp.eq.s32.totalorder %s25, 0
      %p66 = por %p64, %p65
      %s67 = ssub.s32 %s26, %s38
      %s68 = ssub.s32 %s27, %s34
      %s69 = sor.u32 %s67, %s68
      %p70 = scmp.eq.s32.totalorder %s69, 0
      %s72 = sadd.s32 %s71, 1
      %s73 = scalar_select %p70, %s71, %s72
      %p76 = pneg %p70
      %p77 = scmp.eq.s32.totalorder %s19, 1
      %p78 = por %p76, %p77
      %p79 = scmp.ne.s32.totalorder %s71, %s74
      %p80 = scmp.eq.s32.totalorder %s19, 0
      %p81 = por %p79, %p80
      %p82 = scmp.ne.s32.totalorder %s71, %s74
      %p83 = scmp.eq.s32.totalorder %s24, 1
      %p84 = por %p82, %p83
      %p85 = scmp.ne.s32.totalorder %s74, %s75
      %p86 = scmp.eq.s32.totalorder %s24, 0
      %p87 = por %p85, %p86
      %p88 = scmp.ne.s32.totalorder %s74, %s75
      %p89 = scmp.eq.s32.totalorder %s25, 1
      %p90 = por %p88, %p89
      %p92 = scmp.ne.s32.totalorder %s75, %s91
      %p93 = scmp.eq.s32.totalorder %s25, 0
      %p94 = por %p92, %p93
      %s95 = ssub.s32 %s26, %s38
      %p96 = scmp.eq.s32.totalorder %s95, 0
      %s98 = sadd.s32 %s97, 1
      %s99 = scalar_select %p96, %s97, %s98
      %p102 = pneg %p96
      %p103 = scmp.eq.s32.totalorder %s19, 1
      %p104 = por %p102, %p103
      %p105 = scmp.ne.s32.totalorder %s97, %s100
      %p106 = scmp.eq.s32.totalorder %s19, 0
      %p107 = por %p105, %p106
      %p108 = scmp.ne.s32.totalorder %s97, %s100
      %p109 = scmp.eq.s32.totalorder %s24, 1
      %p110 = por %p108, %p109
      %p111 = scmp.ne.s32.totalorder %s100, %s101
      %p112 = scmp.eq.s32.totalorder %s24, 0
      %p113 = por %p111, %p112
      %p114 = scmp.ne.s32.totalorder %s100, %s101
      %p115 = scmp.eq.s32.totalorder %s25, 1
      %p116 = por %p114, %p115
      %p118 = scmp.ne.s32.totalorder %s101, %s117
      %p119 = scmp.eq.s32.totalorder %s25, 0
      %p120 = por %p118, %p119
      %s121 = ssub.s32 %s26, %s38
      %p122 = scmp.eq.s32.totalorder %s121, 0
      %s124 = sadd.s32 %s123, 1
      %s125 = scalar_select %p122, %s123, %s124
      %p128 = pneg %p122
      %p129 = scmp.eq.s32.totalorder %s19, 1
      %p130 = por %p128, %p129
      %p131 = scmp.ne.s32.totalorder %s123, %s126
      %p132 = scmp.eq.s32.totalorder %s19, 0
      %p133 = por %p131, %p132
      %p134 = scmp.ne.s32.totalorder %s123, %s126
      %p135 = scmp.eq.s32.totalorder %s24, 1
      %p136 = por %p134, %p135
      %p137 = scmp.ne.s32.totalorder %s126, %s127
      %p138 = scmp.eq.s32.totalorder %s24, 0
      %p139 = por %p137, %p138
      %p140 = scmp.ne.s32.totalorder %s126, %s127
      %p141 = scmp.eq.s32.totalorder %s25, 1
      %p142 = por %p140, %p141
      %p144 = scmp.ne.s32.totalorder %s127, %s143
      %p145 = scmp.eq.s32.totalorder %s25, 0
      %p146 = por %p144, %p145
      %s148 = sadd.s32 %s147, 1
      %p151 = scmp.eq.s32.totalorder %s19, 1
      %p152 = scmp.ne.s32.totalorder %s147, %s149
      %p153 = scmp.eq.s32.totalorder %s19, 0
      %p154 = por %p152, %p153
      %p155 = scmp.ne.s32.totalorder %s147, %s149
      %p156 = scmp.eq.s32.totalorder %s24, 1
      %p157 = por %p155, %p156
      %p158 = scmp.ne.s32.totalorder %s149, %s150
      %p159 = scmp.eq.s32.totalorder %s24, 0
      %p160 = por %p158, %p159
      %p161 = scmp.ne.s32.totalorder %s149, %s150
      %p162 = scmp.eq.s32.totalorder %s25, 1
      %p163 = por %p161, %p162
      %p165 = scmp.ne.s32.totalorder %s150, %s164
      %p166 = scmp.eq.s32.totalorder %s25, 0
      %p167 = por %p165, %p166
      %s169 = sadd.s32 %s168, 1
      %p172 = scmp.eq.s32.totalorder %s19, 1
      %p173 = scmp.ne.s32.totalorder %s168, %s170
      %p174 = scmp.eq.s32.totalorder %s19, 0
      %p175 = por %p173, %p174
      %p176 = scmp.ne.s32.totalorder %s168, %s170
      %p177 = scmp.eq.s32.totalorder %s24, 1
      %p178 = por %p176, %p177
      %p179 = scmp.ne.s32.totalorder %s170, %s171
      %p180 = scmp.eq.s32.totalorder %s24, 0
      %p181 = por %p179, %p180
      %p182 = scmp.ne.s32.totalorder %s170, %s171
      %p183 = scmp.eq.s32.totalorder %s25, 1
      %p184 = por %p182, %p183
      %p186 = scmp.ne.s32.totalorder %s171, %s185
      %p187 = scmp.eq.s32.totalorder %s25, 0
      %p188 = por %p186, %p187
      %s190 = sadd.s32 %s189, 1
      %p193 = scmp.eq.s32.totalorder %s19, 1
      %p194 = scmp.ne.s32.totalorder %s189, %s191
      %p195 = scmp.eq.s32.totalorder %s19, 0
      %p196 = por %p194, %p195
      %p197 = scmp.ne.s32.totalorder %s189, %s191
      %p198 = scmp.eq.s32.totalorder %s24, 1
      %p199 = por %p197, %p198
      %p200 = scmp.ne.s32.totalorder %s191, %s192
      %p201 = scmp.eq.s32.totalorder %s24, 0
      %p202 = por %p200, %p201
      %p203 = scmp.ne.s32.totalorder %s191, %s192
      %p204 = scmp.eq.s32.totalorder %s25, 1
      %p205 = por %p203, %p204
      %p207 = scmp.ne.s32.totalorder %s192, %s206
      %p208 = scmp.eq.s32.totalorder %s25, 0
      %p209 = por %p207, %p208
      %s211 = sadd.s32 %s210, 1
      %p214 = scmp.eq.s32.totalorder %s19, 1
      %p215 = scmp.ne.s32.totalorder %s210, %s212
      %p216 = scmp.eq.s32.totalorder %s19, 0
      %p217 = por %p215, %p216
      %p218 = scmp.ne.s32.totalorder %s210, %s212
      %p219 = scmp.eq.s32.totalorder %s24, 1
      %p220 = por %p218, %p219
      %p221 = scmp.ne.s32.totalorder %s212, %s213
      %p222 = scmp.eq.s32.totalorder %s24, 0
      %p223 = por %p221, %p222
      %p224 = scmp.ne.s32.totalorder %s212, %s213
      %p225 = scmp.eq.s32.totalorder %s25, 1
      %p226 = por %p224, %p225
      %p228 = scmp.ne.s32.totalorder %s213, %s227
      %p229 = scmp.eq.s32.totalorder %s25, 0
      %p230 = por %p228, %p229
      %s232 = sadd.s32 %s231, 1
      %p235 = scmp.eq.s32.totalorder %s19, 1
      %p236 = scmp.ne.s32.totalorder %s231, %s233
      %p237 = scmp.eq.s32.totalorder %s19, 0
      %p238 = por %p236, %p237
      %p239 = scmp.ne.s32.totalorder %s231, %s233
      %p240 = scmp.eq.s32.totalorder %s24, 1
      %p241 = por %p239, %p240
      %p242 = scmp.ne.s32.totalorder %s233, %s234
      %p243 = scmp.eq.s32.totalorder %s24, 0
      %p244 = por %p242, %p243
      %p245 = scmp.ne.s32.totalorder %s233, %s234
      %p246 = scmp.eq.s32.totalorder %s25, 1
      %p247 = por %p245, %p246
      %p249 = scmp.ne.s32.totalorder %s234, %s248
      %p250 = scmp.eq.s32.totalorder %s25, 0
      %p251 = por %p249, %p250
      %s253 = sadd.s32 %s252, 1
      %p256 = scmp.eq.s32.totalorder %s19, 1
      %p257 = scmp.ne.s32.totalorder %s252, %s254
      %p258 = scmp.eq.s32.totalorder %s19, 0
      %p259 = por %p257, %p258
      %p260 = scmp.ne.s32.totalorder %s252, %s254
      %p261 = scmp.eq.s32.totalorder %s24, 1
      %p262 = por %p260, %p261
      %p263 = scmp.ne.s32.totalorder %s254, %s255
      %p264 = scmp.eq.s32.totalorder %s24, 0
      %p265 = por %p263, %p264
      %p266 = scmp.ne.s32.totalorder %s254, %s255
      %p267 = scmp.eq.s32.totalorder %s25, 1
      %p268 = por %p266, %p267
      %p270 = scmp.ne.s32.totalorder %s255, %s269
      %p271 = scmp.eq.s32.totalorder %s25, 0
      %p272 = por %p270, %p271
      %s273 = ssub.s32 %s26, %s38
      %s274 = ssub.s32 %s27, %s34
      %s275 = sor.u32 %s273, %s274
      %p276 = scmp.eq.s32.totalorder %s275, 0
      %s278 = sadd.s32 %s277, 1
      %s279 = scalar_select %p276, %s277, %s278
      %p282 = pneg %p276
      %p283 = scmp.eq.s32.totalorder %s19, 1
      %p284 = por %p282, %p283
      %p285 = scmp.ne.s32.totalorder %s277, %s280
      %p286 = scmp.eq.s32.totalorder %s19, 0
      %p287 = por %p285, %p286
      %p288 = scmp.ne.s32.totalorder %s277, %s280
      %p289 = scmp.eq.s32.totalorder %s24, 1
      %p290 = por %p288, %p289
      %p291 = scmp.ne.s32.totalorder %s280, %s281
      %p292 = scmp.eq.s32.totalorder %s24, 0
      %p293 = por %p291, %p292
      %p294 = scmp.ne.s32.totalorder %s280, %s281
      %p295 = scmp.eq.s32.totalorder %s25, 1
      %p296 = por %p294, %p295
      %p298 = scmp.ne.s32.totalorder %s281, %s297
      %p299 = scmp.eq.s32.totalorder %s25, 0
      %p300 = por %p298, %p299
      %p301 = scmp.le.s32.totalorder 1, %s19
      %p302 = scmp.lt.s32.totalorder %s19, 3
      %p303 = pnand %p301, %p302
      %p304 = pneg %p303
      // Predicated region
      $region9: #{tpu_custom_call.1} parent=5 // pred_check
        _
      $region10: #{tpu_custom_call.1} parent=5 // pred_check_branch
        %306 = sbr.rel (%p303) target = $region12
      $region11: #{tpu_custom_call.1} parent=5 // pred_region
        %s307 = ssub.s32 %s19, 1
        // Predicated region
        $region13: #{tpu_custom_call.1} parent=11 // pred_check
          %p308 = pneg %p160
        $region14: #{tpu_custom_call.1} parent=11 // pred_check_branch
          %310 = sbr.rel (%p308) target = $region16
        $region15: #{tpu_custom_call.1} parent=11 // pred_region
          _
        $region16: #{tpu_custom_call.1} parent=11 // pred_fallthru
          _
        // Predicated region
        $region17: #{tpu_custom_call.1} parent=11 // pred_check
          %p311 = pneg %p181
        $region18: #{tpu_custom_call.1} parent=11 // pred_check_branch
          %313 = sbr.rel (%p311) target = $region20
        $region19: #{tpu_custom_call.1} parent=11 // pred_region
          _
        $region20: #{tpu_custom_call.1} parent=11 // pred_fallthru
          _
        // Predicated region
        $region21: #{tpu_custom_call.1} parent=11 // pred_check
          %p314 = pneg %p202
        $region22: #{tpu_custom_call.1} parent=11 // pred_check_branch
          %316 = sbr.rel (%p314) target = $region24
        $region23: #{tpu_custom_call.1} parent=11 // pred_region
          _
        $region24: #{tpu_custom_call.1} parent=11 // pred_fallthru
          _
        // Predicated region
        $region25: #{tpu_custom_call.1} parent=11 // pred_check
          %p317 = pneg %p223
        $region26: #{tpu_custom_call.1} parent=11 // pred_check_branch
          %319 = sbr.rel (%p317) target = $region28
        $region27: #{tpu_custom_call.1} parent=11 // pred_region
          _
        $region28: #{tpu_custom_call.1} parent=11 // pred_fallthru
          _
        // Predicated region
        $region29: #{tpu_custom_call.1} parent=11 // pred_check
          %p320 = pneg %p244
        $region30: #{tpu_custom_call.1} parent=11 // pred_check_branch
          %322 = sbr.rel (%p320) target = $region32
        $region31: #{tpu_custom_call.1} parent=11 // pred_region
          _
        $region32: #{tpu_custom_call.1} parent=11 // pred_fallthru
          _
        // Predicated region
        $region33: #{tpu_custom_call.1} parent=11 // pred_check
          %p323 = pneg %p265
        $region34: #{tpu_custom_call.1} parent=11 // pred_check_branch
          %325 = sbr.rel (%p323) target = $region36
        $region35: #{tpu_custom_call.1} parent=11 // pred_region
          _
        $region36: #{tpu_custom_call.1} parent=11 // pred_fallthru
          _
      $region12: #{tpu_custom_call.1} parent=5 // pred_fallthru
        _
      %p326 = scmp.lt.s32.totalorder %s19, 2
      // Predicated region
      $region37: #{tpu_custom_call.1} parent=5 // pred_check
        %p327 = pneg %p326
      $region38: #{tpu_custom_call.1} parent=5 // pred_check_branch
        %329 = sbr.rel (%p327) target = $region40
      $region39: #{tpu_custom_call.1} parent=5 // pred_region
        // Predicated region
        $region41: #{tpu_custom_call.1} parent=39 // pred_check
          %p330 = pneg %p53
        $region42: #{tpu_custom_call.1} parent=39 // pred_check_branch
          %332 = sbr.rel (%p330) target = $region44
        $region43: #{tpu_custom_call.1} parent=39 // pred_region
          %p333 = scmp.lt.s32.totalorder %s26, 1
          %s334 = scalar_select %p333, %s26, 1
          %p335 = scmp.lt.s32.totalorder %s27, 0
          %s336 = scalar_select %p335, %s27, 0
          %s337 = sadd.s32 %s336, %s334
          %s338 = smul.addr %s337, 8
          %s339 = scalar_lea.vmem %s0, %s338
        $region44: #{tpu_custom_call.1} parent=39 // pred_fallthru
          _
        // Predicated region
        $region45: #{tpu_custom_call.1} parent=39 // pred_check
          %p340 = pneg %p81
        $region46: #{tpu_custom_call.1} parent=39 // pred_check_branch
          %342 = sbr.rel (%p340) target = $region48
        $region47: #{tpu_custom_call.1} parent=39 // pred_region
          %p343 = scmp.lt.s32.totalorder %s26, 1
          %s344 = scalar_select %p343, %s26, 1
          %p345 = scmp.lt.s32.totalorder %s27, 0
          %s346 = scalar_select %p345, %s27, 0
          %s347 = sadd.s32 %s346, %s344
          %s348 = smul.addr %s347, 8
          %s349 = scalar_lea.vmem %s1, %s348
        $region48: #{tpu_custom_call.1} parent=39 // pred_fallthru
          _
        // Predicated region
        $region49: #{tpu_custom_call.1} parent=39 // pred_check
          %p350 = pneg %p107
        $region50: #{tpu_custom_call.1} parent=39 // pred_check_branch
          %352 = sbr.rel (%p350) target = $region52
        $region51: #{tpu_custom_call.1} parent=39 // pred_region
          %p353 = scmp.lt.s32.totalorder %s26, 1
          %s354 = scalar_select %p353, %s26, 1
          %s355 = smul.addr %s354, 4
          %s356 = smul.addr %s355, 8
          %s357 = scalar_lea.vmem %s2, %s356
        $region52: #{tpu_custom_call.1} parent=39 // pred_fallthru
          _
        // Predicated region
        $region53: #{tpu_custom_call.1} parent=39 // pred_check
          %p358 = pneg %p133
        $region54: #{tpu_custom_call.1} parent=39 // pred_check_branch
          %360 = sbr.rel (%p358) target = $region56
        $region55: #{tpu_custom_call.1} parent=39 // pred_region
          %p361 = scmp.lt.s32.totalorder %s26, 1
          %s362 = scalar_select %p361, %s26, 1
          %s363 = smul.addr %s362, 2
          %s364 = smul.addr %s363, 8
          %s365 = scalar_lea.vmem %s3, %s364
        $region56: #{tpu_custom_call.1} parent=39 // pred_fallthru
          _
      $region40: #{tpu_custom_call.1} parent=5 // pred_fallthru
        _
      %p366 = scmp.le.s32.totalorder 1, %s19
      %p367 = scmp.lt.s32.totalorder %s19, 3
      %p368 = pnand %p366, %p367
      %p369 = pneg %p368
      // Predicated region
      $region57: #{tpu_custom_call.1} parent=5 // pred_check
        _
      $region58: #{tpu_custom_call.1} parent=5 // pred_check_branch
        %371 = sbr.rel (%p368) target = $region60
      $region59: #{tpu_custom_call.1} parent=5 // pred_region
        %s372 = ssub.s32 %s19, 1
        %p373 = scmp.lt.s32.totalorder %s28, 1
        %s374 = scalar_select %p373, %s28, 1
        %p375 = scmp.lt.s32.totalorder %s29, 0
        %s376 = scalar_select %p375, %s29, 0
        %s377 = sadd.s32 %s376, %s374
        %s378 = smul.addr %s377, 8
        %s379 = scalar_lea.vmem %s0, %s378
        %p380 = pneg %p59
        %p381 = pneg %p56
        %p382 = scmp.lt.s32.totalorder %s28, 1
        %s383 = scalar_select %p382, %s28, 1
        %p384 = scmp.lt.s32.totalorder %s29, 0
        %s385 = scalar_select %p384, %s29, 0
        %s386 = sadd.s32 %s385, %s383
        %s387 = smul.addr %s386, 8
        %s388 = scalar_lea.vmem %s1, %s387
        %p389 = pneg %p87
        %p390 = pneg %p84
        %p391 = scmp.lt.s32.totalorder %s28, 1
        %s392 = scalar_select %p391, %s28, 1
        %s393 = smul.addr %s392, 4
        %s394 = smul.addr %s393, 8
        %s395 = scalar_lea.vmem %s2, %s394
        %p396 = pneg %p113
        %p397 = pneg %p110
        %p398 = scmp.lt.s32.totalorder %s28, 1
        %s399 = scalar_select %p398, %s28, 1
        %s400 = smul.addr %s399, 2
        %s401 = smul.addr %s400, 8
        %s402 = scalar_lea.vmem %s3, %s401
        %p403 = pneg %p139
        %p404 = pneg %p136
        %p405 = pneg %p160
        %p406 = pneg %p157
        %p407 = pneg %p181
        %p408 = pneg %p178
        %p409 = pneg %p202
        %p410 = pneg %p199
        %p411 = pneg %p223
        %p412 = pneg %p220
        %p413 = pneg %p244
        %p414 = pneg %p241
        %p415 = pneg %p265
        %p416 = pneg %p262
        %p417 = pneg %p293
        %p418 = pneg %p290
        %s419 = sand.u32 %s280, 1
        %s420 = scalar_lea.sflag [#allocation3], %s419
        %s421 = sand.u32 %s280, 1
        %s422 = smul.addr %s421, 8
        %s423 = scalar_lea.vmem [#allocation2], %s422
        %p424 = scmp.lt.s32.totalorder %s28, 1
        %s425 = scalar_select %p424, %s28, 1
        %p426 = scmp.lt.s32.totalorder %s29, 0
        %s427 = scalar_select %p426, %s29, 0
        %s428 = sadd.s32 %s427, %s425
        %s429 = smul.addr %s428, 8
        %s430 = scalar_lea.vmem %s0, %s429
        %p431 = scmp.lt.s32.totalorder %s28, 1
        %s432 = scalar_select %p431, %s28, 1
        %p433 = scmp.lt.s32.totalorder %s29, 0
        %s434 = scalar_select %p433, %s29, 0
        %s435 = sadd.s32 %s434, %s432
        %s436 = smul.addr %s435, 8
        %s437 = scalar_lea.vmem %s1, %s436
        %p438 = scmp.lt.s32.totalorder %s28, 1
        %s439 = scalar_select %p438, %s28, 1
        %s440 = smul.addr %s439, 4
        %s441 = smul.addr %s440, 8
        %s442 = scalar_lea.vmem %s2, %s441
        %p443 = scmp.lt.s32.totalorder %s28, 1
        %s444 = scalar_select %p443, %s28, 1
        %s445 = smul.addr %s444, 2
        %s446 = smul.addr %s445, 8
        %s447 = scalar_lea.vmem %s3, %s446
        %v448 = vld [vmem:[%s9] sm:$0x1]
        %v449 = vld [vmem:[%s9 + $0x1] sm:$0x1]
        %v450 = vld [vmem:[%s9 + $0x2] sm:$0x1]
        %v451 = vld [vmem:[%s9 + $0x3] sm:$0x1]
        %v452 = vld [vmem:[%s9 + $0x4] sm:$0x1]
        %v453 = vld [vmem:[%s9 + $0x5] sm:$0x1]
        %v454 = vld [vmem:[%s9 + $0x6] sm:$0x1]
        %v455 = vld [vmem:[%s430] sm:$0xff]
        %v456 = vld [vmem:[%s437] sm:$0xff]
        %v457 = vadd.f32 %v455, %v456
        %v458 = vld [vmem:[%s4] sm:$0xff]
        %v459 = vld [vmem:[%s4 + $0x8] sm:$0xff]
        %v460 = vld [vmem:[%s4 + $0x10] sm:$0xff]
        %v461 = vld [vmem:[%s4 + $0x18] sm:$0xff]
        %v462 = vlaneseq
        %v463 = vshrl.u32 %v462, 7
        %v464 = vsub.s32 0, %v463
        %v465 = vrot.slane %v448, %v464
        %vm466 = vcmask 261120
        %v468 = vsel %vm466, %v457, 0
        %470 = vmatprep.subr.mxu0 0.0
        %471 = vmatpush1.msra.mxu0 %v458
        %472 = vmatprep.subr.mxu0 0.0
        %473 = vmatpush1.msra.mxu0 %v459
        %474 = vmatprep.subr.mxu0 0.0
        %475 = vmatpush1.msra.mxu0 %v460
        %476 = vmatprep.subr.mxu0 0.0
        %477 = vmatpush1.msra.mxu0 %v461
        %478 = vmatprep.subr.mxu0 0.0
        %479 = vmatpush1.msra.mxu0 0.0
        %480 = vmatprep.subr.mxu0 0.0
        %481 = vmatpush1.msra.mxu0 0.0
        %482 = vmatprep.subr.mxu0 0.0
        %483 = vmatpush1.msra.mxu0 0.0
        %484 = vmatprep.subr.mxu0 0.0
        %485 = vmatpush1.msra.mxu0 0.0
        %486 = vmatprep.subr.mxu0 0.0
        %487 = vmatpush1.msra.mxu0 0.0
        %488 = vmatprep.subr.mxu0 0.0
        %489 = vmatpush1.msra.mxu0 0.0
        %490 = vmatprep.subr.mxu0 0.0
        %491 = vmatpush1.msra.mxu0 0.0
        %492 = vmatprep.subr.mxu0 0.0
        %493 = vmatpush1.msra.mxu0 0.0
        %494 = vmatprep.subr.mxu0 0.0
        %495 = vmatpush1.msra.mxu0 0.0
        %496 = vmatprep.subr.mxu0 0.0
        %497 = vmatpush1.msra.mxu0 0.0
        %498 = vmatprep.subr.mxu0 0.0
        %499 = vmatpush1.msra.mxu0 0.0
        %500 = vmatprep.subr.mxu0 0.0
        %501 = vmatpush1.msra.mxu0 0.0
        %502 = vmatprep.subr.mxu0 0.0
        %503 = vmatpush1.msra.mxu0 0.0
        %504 = vmatprep.subr.mxu0 0.0
        %505 = vmatpush1.msra.mxu0 0.0
        %506 = vmatprep.subr.mxu0 0.0
        %507 = vmatpush1.msra.mxu0 0.0
        %508 = vmatprep.subr.mxu0 0.0
        %509 = vmatpush1.msra.mxu0 0.0
        %510 = vmatprep.subr.mxu0 0.0
        %511 = vmatpush1.msra.mxu0 0.0
        %512 = vmatprep.subr.mxu0 0.0
        %513 = vmatpush1.msra.mxu0 0.0
        %514 = vmatprep.subr.mxu0 0.0
        %515 = vmatpush1.msra.mxu0 0.0
        %516 = vmatprep.subr.mxu0 0.0
        %517 = vmatpush1.msra.mxu0 0.0
        %518 = vmatprep.subr.mxu0 0.0
        %519 = vmatpush1.msra.mxu0 0.0
        %520 = vmatprep.subr.mxu0 0.0
        %521 = vmatpush1.msra.mxu0 0.0
        %522 = vmatprep.subr.mxu0 0.0
        %523 = vmatpush1.msra.mxu0 0.0
        %524 = vmatprep.subr.mxu0 0.0
        %525 = vmatpush1.msra.mxu0 0.0
        %526 = vmatprep.subr.mxu0 0.0
        %527 = vmatpush1.msra.mxu0 0.0
        %528 = vmatprep.subr.mxu0 0.0
        %529 = vmatpush1.msra.mxu0 0.0
        %530 = vmatprep.subr.mxu0 0.0
        %531 = vmatpush1.msra.mxu0 0.0
        %532 = vmatprep.subr.mxu0 0.0
        %533 = vmatpush1.msra.mxu0 0.0
        %534 = vmatprep.mubr.f32.mxu0 0.0
        %535 = vmatmul.mubr.f32.gmra.mrb[0].mxu0 %v468
        %v536 = vpop.f32.mrb[0].mxu0
        %v537 = vadd.f32 %v465, %v536
        %v538 = vpop.f32.mrb[0].mxu0
        %539 = vdwg.mxu0
        %v540 = vld [vmem:[%s442] sm:$0xff]
        %v541 = vld [vmem:[%s442 + $0x8] sm:$0xff]
        %v542 = vld [vmem:[%s442 + $0x10] sm:$0xff]
        %v543 = vld [vmem:[%s442 + $0x18] sm:$0xff]
        %v544 = vld [vmem:[%s447] sm:$0xff]
        %v545 = vld [vmem:[%s447 + $0x8] sm:$0xff]
        %vm546 = vcmask 64512
        %v548 = vsel %vm546, %v537, 0
        %550 = vmatprep.subr.mxu0 0.0
        %551 = vmatpush1.msra.mxu0 %v540
        %552 = vmatprep.subr.mxu0 0.0
        %553 = vmatpush1.msra.mxu0 0.0
        %554 = vmatprep.subr.mxu0 0.0
        %555 = vmatpush1.msra.mxu0 0.0
        %556 = vmatprep.subr.mxu0 0.0
        %557 = vmatpush1.msra.mxu0 0.0
        %558 = vmatprep.subr.mxu0 0.0
        %559 = vmatpush1.msra.mxu0 0.0
        %560 = vmatprep.subr.mxu0 0.0
        %561 = vmatpush1.msra.mxu0 0.0
        %562 = vmatprep.subr.mxu0 0.0
        %563 = vmatpush1.msra.mxu0 0.0
        %564 = vmatprep.subr.mxu0 0.0
        %565 = vmatpush1.msra.mxu0 0.0
        %566 = vmatprep.subr.mxu0 0.0
        %567 = vmatpush1.msra.mxu0 0.0
        %568 = vmatprep.subr.mxu0 0.0
        %569 = vmatpush1.msra.mxu0 0.0
        %570 = vmatprep.subr.mxu0 0.0
        %571 = vmatpush1.msra.mxu0 0.0
        %572 = vmatprep.subr.mxu0 0.0
        %573 = vmatpush1.msra.mxu0 0.0
        %574 = vmatprep.subr.mxu0 0.0
        %575 = vmatpush1.msra.mxu0 0.0
        %576 = vmatprep.subr.mxu0 0.0
        %577 = vmatpush1.msra.mxu0 0.0
        %578 = vmatprep.subr.mxu0 0.0
        %579 = vmatpush1.msra.mxu0 0.0
        %580 = vmatprep.subr.mxu0 0.0
        %581 = vmatpush1.msra.mxu0 0.0
        %582 = vmatprep.subr.mxu0 0.0
        %583 = vmatpush1.msra.mxu0 0.0
        %584 = vmatprep.subr.mxu0 0.0
        %585 = vmatpush1.msra.mxu0 0.0
        %586 = vmatprep.subr.mxu0 0.0
        %587 = vmatpush1.msra.mxu0 0.0
        %588 = vmatprep.subr.mxu0 0.0
        %589 = vmatpush1.msra.mxu0 0.0
        %590 = vmatprep.subr.mxu0 0.0
        %591 = vmatpush1.msra.mxu0 0.0
        %592 = vmatprep.subr.mxu0 0.0
        %593 = vmatpush1.msra.mxu0 0.0
        %594 = vmatprep.subr.mxu0 0.0
        %595 = vmatpush1.msra.mxu0 0.0
        %596 = vmatprep.subr.mxu0 0.0
        %597 = vmatpush1.msra.mxu0 0.0
        %598 = vmatprep.subr.mxu0 0.0
        %599 = vmatpush1.msra.mxu0 0.0
        %600 = vmatprep.subr.mxu0 0.0
        %601 = vmatpush1.msra.mxu0 0.0
        %602 = vmatprep.subr.mxu0 0.0
        %603 = vmatpush1.msra.mxu0 0.0
        %604 = vmatprep.subr.mxu0 0.0
        %605 = vmatpush1.msra.mxu0 0.0
        %606 = vmatprep.subr.mxu0 0.0
        %607 = vmatpush1.msra.mxu0 0.0
        %608 = vmatprep.subr.mxu0 0.0
        %609 = vmatpush1.msra.mxu0 0.0
        %610 = vmatprep.subr.mxu0 0.0
        %611 = vmatpush1.msra.mxu0 0.0
        %612 = vmatprep.subr.mxu0 0.0
        %613 = vmatpush1.msra.mxu0 0.0
        %614 = vmatprep.mubr.f32.mxu0 0.0
        %615 = vmatmul.mubr.f32.gmra.mrb[0].mxu0 %v548
        %v616 = vpop.f32.mrb[0].mxu0
        %v617 = vadd.f32 0.0, %v616
        %v618 = vpop.f32.mrb[0].mxu0
        %619 = vdwg.mxu0
        %vm620 = vcmask 130048
        %v621 = vsel %vm620, %v617, -inf
        %622 = vmax.xlane.f32.xlu0 %v621
        %v623 = vpop.xlane.xlu0 %622
        %v624 = vsub.f32 %v617, %v623
        %v625 = vmul.f32 %v624, 1.442695
        %v626 = vpow.pop %v625
        %v627 = vsel %vm620, %v626, 0.0
        %628 = vadd.xlane.f32.xlu0 %v627
        %v629 = vpop.xlane.xlu0 %628
        %v630 = vrcp.pop %v629
        %v631 = vmul.f32 %v626, %v630
        %v633 = vsel %vm620, %v631, 0
        %635 = vmatprep.subr.mxu0 0.0
        %636 = vmatpush1.msra.mxu0 %v544
        %637 = vmatprep.subr.mxu0 0.0
        %638 = vmatpush1.msra.mxu0 %v545
        %639 = vmatprep.subr.mxu0 0.0
        %640 = vmatpush1.msra.mxu0 0.0
        %641 = vmatprep.subr.mxu0 0.0
        %642 = vmatpush1.msra.mxu0 0.0
        %643 = vmatprep.subr.mxu0 0.0
        %644 = vmatpush1.msra.mxu0 0.0
        %645 = vmatprep.subr.mxu0 0.0
        %646 = vmatpush1.msra.mxu0 0.0
        %647 = vmatprep.subr.mxu0 0.0
        %648 = vmatpush1.msra.mxu0 0.0
        %649 = vmatprep.subr.mxu0 0.0
        %650 = vmatpush1.msra.mxu0 0.0
        %651 = vmatprep.subr.mxu0 0.0
        %652 = vmatpush1.msra.mxu0 0.0
        %653 = vmatprep.subr.mxu0 0.0
        %654 = vmatpush1.msra.mxu0 0.0
        %655 = vmatprep.subr.mxu0 0.0
        %656 = vmatpush1.msra.mxu0 0.0
        %657 = vmatprep.subr.mxu0 0.0
        %658 = vmatpush1.msra.mxu0 0.0
        %659 = vmatprep.subr.mxu0 0.0
        %660 = vmatpush1.msra.mxu0 0.0
        %661 = vmatprep.subr.mxu0 0.0
        %662 = vmatpush1.msra.mxu0 0.0
        %663 = vmatprep.subr.mxu0 0.0
        %664 = vmatpush1.msra.mxu0 0.0
        %665 = vmatprep.subr.mxu0 0.0
        %666 = vmatpush1.msra.mxu0 0.0
        %667 = vmatprep.subr.mxu0 0.0
        %668 = vmatpush1.msra.mxu0 0.0
        %669 = vmatprep.subr.mxu0 0.0
        %670 = vmatpush1.msra.mxu0 0.0
        %671 = vmatprep.subr.mxu0 0.0
        %672 = vmatpush1.msra.mxu0 0.0
        %673 = vmatprep.subr.mxu0 0.0
        %674 = vmatpush1.msra.mxu0 0.0
        %675 = vmatprep.subr.mxu0 0.0
        %676 = vmatpush1.msra.mxu0 0.0
        %677 = vmatprep.subr.mxu0 0.0
        %678 = vmatpush1.msra.mxu0 0.0
        %679 = vmatprep.subr.mxu0 0.0
        %680 = vmatpush1.msra.mxu0 0.0
        %681 = vmatprep.subr.mxu0 0.0
        %682 = vmatpush1.msra.mxu0 0.0
        %683 = vmatprep.subr.mxu0 0.0
        %684 = vmatpush1.msra.mxu0 0.0
        %685 = vmatprep.subr.mxu0 0.0
        %686 = vmatpush1.msra.mxu0 0.0
        %687 = vmatprep.subr.mxu0 0.0
        %688 = vmatpush1.msra.mxu0 0.0
        %689 = vmatprep.subr.mxu0 0.0
        %690 = vmatpush1.msra.mxu0 0.0
        %691 = vmatprep.subr.mxu0 0.0
        %692 = vmatpush1.msra.mxu0 0.0
        %693 = vmatprep.subr.mxu0 0.0
        %694 = vmatpush1.msra.mxu0 0.0
        %695 = vmatprep.subr.mxu0 0.0
        %696 = vmatpush1.msra.mxu0 0.0
        %697 = vmatprep.subr.mxu0 0.0
        %698 = vmatpush1.msra.mxu0 0.0
        %699 = vmatprep.mubr.f32.mxu0 0.0
        %700 = vmatmul.mubr.f32.gmra.mrb[0].mxu0 %v633
        %v701 = vpop.f32.mrb[0].mxu0
        %v702 = vadd.f32 0.0, %v701
        %v703 = vpop.f32.mrb[0].mxu0
        %704 = vdwg.mxu0
        %705 = vrot.lane.b32.xlu0 %v537, 120
        %v706 = vpop.permute.xlu0 %705
        %v707 = vsel %vm546, %v706, 0
        %709 = vmatprep.subr.mxu0 0.0
        %710 = vmatpush1.msra.mxu0 %v541
        %711 = vmatprep.subr.mxu0 0.0
        %712 = vmatpush1.msra.mxu0 0.0
        %713 = vmatprep.subr.mxu0 0.0
        %714 = vmatpush1.msra.mxu0 0.0
        %715 = vmatprep.subr.mxu0 0.0
        %716 = vmatpush1.msra.mxu0 0.0
        %717 = vmatprep.subr.mxu0 0.0
        %718 = vmatpush1.msra.mxu0 0.0
        %719 = vmatprep.subr.mxu0 0.0
        %720 = vmatpush1.msra.mxu0 0.0
        %721 = vmatprep.subr.mxu0 0.0
        %722 = vmatpush1.msra.mxu0 0.0
        %723 = vmatprep.subr.mxu0 0.0
        %724 = vmatpush1.msra.mxu0 0.0
        %725 = vmatprep.subr.mxu0 0.0
        %726 = vmatpush1.msra.mxu0 0.0
        %727 = vmatprep.subr.mxu0 0.0
        %728 = vmatpush1.msra.mxu0 0.0
        %729 = vmatprep.subr.mxu0 0.0
        %730 = vmatpush1.msra.mxu0 0.0
        %731 = vmatprep.subr.mxu0 0.0
        %732 = vmatpush1.msra.mxu0 0.0
        %733 = vmatprep.subr.mxu0 0.0
        %734 = vmatpush1.msra.mxu0 0.0
        %735 = vmatprep.subr.mxu0 0.0
        %736 = vmatpush1.msra.mxu0 0.0
        %737 = vmatprep.subr.mxu0 0.0
        %738 = vmatpush1.msra.mxu0 0.0
        %739 = vmatprep.subr.mxu0 0.0
        %740 = vmatpush1.msra.mxu0 0.0
        %741 = vmatprep.subr.mxu0 0.0
        %742 = vmatpush1.msra.mxu0 0.0
        %743 = vmatprep.subr.mxu0 0.0
        %744 = vmatpush1.msra.mxu0 0.0
        %745 = vmatprep.subr.mxu0 0.0
        %746 = vmatpush1.msra.mxu0 0.0
        %747 = vmatprep.subr.mxu0 0.0
        %748 = vmatpush1.msra.mxu0 0.0
        %749 = vmatprep.subr.mxu0 0.0
        %750 = vmatpush1.msra.mxu0 0.0
        %751 = vmatprep.subr.mxu0 0.0
        %752 = vmatpush1.msra.mxu0 0.0
        %753 = vmatprep.subr.mxu0 0.0
        %754 = vmatpush1.msra.mxu0 0.0
        %755 = vmatprep.subr.mxu0 0.0
        %756 = vmatpush1.msra.mxu0 0.0
        %757 = vmatprep.subr.mxu0 0.0
        %758 = vmatpush1.msra.mxu0 0.0
        %759 = vmatprep.subr.mxu0 0.0
        %760 = vmatpush1.msra.mxu0 0.0
        %761 = vmatprep.subr.mxu0 0.0
        %762 = vmatpush1.msra.mxu0 0.0
        %763 = vmatprep.subr.mxu0 0.0
        %764 = vmatpush1.msra.mxu0 0.0
        %765 = vmatprep.subr.mxu0 0.0
        %766 = vmatpush1.msra.mxu0 0.0
        %767 = vmatprep.subr.mxu0 0.0
        %768 = vmatpush1.msra.mxu0 0.0
        %769 = vmatprep.subr.mxu0 0.0
        %770 = vmatpush1.msra.mxu0 0.0
        %771 = vmatprep.subr.mxu0 0.0
        %772 = vmatpush1.msra.mxu0 0.0
        %773 = vmatprep.mubr.f32.mxu0 0.0
        %774 = vmatmul.mubr.f32.gmra.mrb[0].mxu0 %v707
        %v775 = vpop.f32.mrb[0].mxu0
        %v776 = vadd.f32 0.0, %v775
        %v777 = vpop.f32.mrb[0].mxu0
        %778 = vdwg.mxu0
        %v779 = vsel %vm620, %v776, -inf
        %780 = vmax.xlane.f32.xlu0 %v779
        %v781 = vpop.xlane.xlu0 %780
        %v782 = vsub.f32 %v776, %v781
        %v783 = vmul.f32 %v782, 1.442695
        %v784 = vpow.pop %v783
        %v785 = vsel %vm620, %v784, 0.0
        %786 = vadd.xlane.f32.xlu0 %v785
        %v787 = vpop.xlane.xlu0 %786
        %v788 = vrcp.pop %v787
        %v789 = vmul.f32 %v784, %v788
        %792 = vrot.lane.b32.xlu0 %v544, 120
        %v793 = vpop.permute.xlu0 %792
        %794 = vrot.lane.b32.xlu0 %v545, 120
        %v795 = vpop.permute.xlu0 %794
        %v799 = vsel %vm620, %v789, 0
        %801 = vmatprep.subr.mxu0 0.0
        %802 = vmatpush1.msra.mxu0 %v793
        %803 = vmatprep.subr.mxu0 0.0
        %804 = vmatpush1.msra.mxu0 %v795
        %805 = vmatprep.subr.mxu0 0.0
        %806 = vmatpush1.msra.mxu0 0.0
        %807 = vmatprep.subr.mxu0 0.0
        %808 = vmatpush1.msra.mxu0 0.0
        %809 = vmatprep.subr.mxu0 0.0
        %810 = vmatpush1.msra.mxu0 0.0
        %811 = vmatprep.subr.mxu0 0.0
        %812 = vmatpush1.msra.mxu0 0.0
        %813 = vmatprep.subr.mxu0 0.0
        %814 = vmatpush1.msra.mxu0 0.0
        %815 = vmatprep.subr.mxu0 0.0
        %816 = vmatpush1.msra.mxu0 0.0
        %817 = vmatprep.subr.mxu0 0.0
        %818 = vmatpush1.msra.mxu0 0.0
        %819 = vmatprep.subr.mxu0 0.0
        %820 = vmatpush1.msra.mxu0 0.0
        %821 = vmatprep.subr.mxu0 0.0
        %822 = vmatpush1.msra.mxu0 0.0
        %823 = vmatprep.subr.mxu0 0.0
        %824 = vmatpush1.msra.mxu0 0.0
        %825 = vmatprep.subr.mxu0 0.0
        %826 = vmatpush1.msra.mxu0 0.0
        %827 = vmatprep.subr.mxu0 0.0
        %828 = vmatpush1.msra.mxu0 0.0
        %829 = vmatprep.subr.mxu0 0.0
        %830 = vmatpush1.msra.mxu0 0.0
        %831 = vmatprep.subr.mxu0 0.0
        %832 = vmatpush1.msra.mxu0 0.0
        %833 = vmatprep.subr.mxu0 0.0
        %834 = vmatpush1.msra.mxu0 0.0
        %835 = vmatprep.subr.mxu0 0.0
        %836 = vmatpush1.msra.mxu0 0.0
        %837 = vmatprep.subr.mxu0 0.0
        %838 = vmatpush1.msra.mxu0 0.0
        %839 = vmatprep.subr.mxu0 0.0
        %840 = vmatpush1.msra.mxu0 0.0
        %841 = vmatprep.subr.mxu0 0.0
        %842 = vmatpush1.msra.mxu0 0.0
        %843 = vmatprep.subr.mxu0 0.0
        %844 = vmatpush1.msra.mxu0 0.0
        %845 = vmatprep.subr.mxu0 0.0
        %846 = vmatpush1.msra.mxu0 0.0
        %847 = vmatprep.subr.mxu0 0.0
        %848 = vmatpush1.msra.mxu0 0.0
        %849 = vmatprep.subr.mxu0 0.0
        %850 = vmatpush1.msra.mxu0 0.0
        %851 = vmatprep.subr.mxu0 0.0
        %852 = vmatpush1.msra.mxu0 0.0
        %853 = vmatprep.subr.mxu0 0.0
        %854 = vmatpush1.msra.mxu0 0.0
        %855 = vmatprep.subr.mxu0 0.0
        %856 = vmatpush1.msra.mxu0 0.0
        %857 = vmatprep.subr.mxu0 0.0
        %858 = vmatpush1.msra.mxu0 0.0
        %859 = vmatprep.subr.mxu0 0.0
        %860 = vmatpush1.msra.mxu0 0.0
        %861 = vmatprep.subr.mxu0 0.0
        %862 = vmatpush1.msra.mxu0 0.0
        %863 = vmatprep.subr.mxu0 0.0
        %864 = vmatpush1.msra.mxu0 0.0
        %865 = vmatprep.mubr.f32.mxu0 0.0
        %866 = vmatmul.mubr.f32.gmra.mrb[0].mxu0 %v799
        %v867 = vpop.f32.mrb[0].mxu0
        %v868 = vadd.f32 0.0, %v867
        %v869 = vpop.f32.mrb[0].mxu0
        %870 = vdwg.mxu0
        %871 = vrot.lane.b32.xlu0 %v537, 112
        %v872 = vpop.permute.xlu0 %871
        %v873 = vsel %vm546, %v872, 0
        %875 = vmatprep.subr.mxu0 0.0
        %876 = vmatpush1.msra.mxu0 %v542
        %877 = vmatprep.subr.mxu0 0.0
        %878 = vmatpush1.msra.mxu0 0.0
        %879 = vmatprep.subr.mxu0 0.0
        %880 = vmatpush1.msra.mxu0 0.0
        %881 = vmatprep.subr.mxu0 0.0
        %882 = vmatpush1.msra.mxu0 0.0
        %883 = vmatprep.subr.mxu0 0.0
        %884 = vmatpush1.msra.mxu0 0.0
        %885 = vmatprep.subr.mxu0 0.0
        %886 = vmatpush1.msra.mxu0 0.0
        %887 = vmatprep.subr.mxu0 0.0
        %888 = vmatpush1.msra.mxu0 0.0
        %889 = vmatprep.subr.mxu0 0.0
        %890 = vmatpush1.msra.mxu0 0.0
        %891 = vmatprep.subr.mxu0 0.0
        %892 = vmatpush1.msra.mxu0 0.0
        %893 = vmatprep.subr.mxu0 0.0
        %894 = vmatpush1.msra.mxu0 0.0
        %895 = vmatprep.subr.mxu0 0.0
        %896 = vmatpush1.msra.mxu0 0.0
        %897 = vmatprep.subr.mxu0 0.0
        %898 = vmatpush1.msra.mxu0 0.0
        %899 = vmatprep.subr.mxu0 0.0
        %900 = vmatpush1.msra.mxu0 0.0
        %901 = vmatprep.subr.mxu0 0.0
        %902 = vmatpush1.msra.mxu0 0.0
        %903 = vmatprep.subr.mxu0 0.0
        %904 = vmatpush1.msra.mxu0 0.0
        %905 = vmatprep.subr.mxu0 0.0
        %906 = vmatpush1.msra.mxu0 0.0
        %907 = vmatprep.subr.mxu0 0.0
        %908 = vmatpush1.msra.mxu0 0.0
        %909 = vmatprep.subr.mxu0 0.0
        %910 = vmatpush1.msra.mxu0 0.0
        %911 = vmatprep.subr.mxu0 0.0
        %912 = vmatpush1.msra.mxu0 0.0
        %913 = vmatprep.subr.mxu0 0.0
        %914 = vmatpush1.msra.mxu0 0.0
        %915 = vmatprep.subr.mxu0 0.0
        %916 = vmatpush1.msra.mxu0 0.0
        %917 = vmatprep.subr.mxu0 0.0
        %918 = vmatpush1.msra.mxu0 0.0
        %919 = vmatprep.subr.mxu0 0.0
        %920 = vmatpush1.msra.mxu0 0.0
        %921 = vmatprep.subr.mxu0 0.0
        %922 = vmatpush1.msra.mxu0 0.0
        %923 = vmatprep.subr.mxu0 0.0
        %924 = vmatpush1.msra.mxu0 0.0
        %925 = vmatprep.subr.mxu0 0.0
        %926 = vmatpush1.msra.mxu0 0.0
        %927 = vmatprep.subr.mxu0 0.0
        %928 = vmatpush1.msra.mxu0 0.0
        %929 = vmatprep.subr.mxu0 0.0
        %930 = vmatpush1.msra.mxu0 0.0
        %931 = vmatprep.subr.mxu0 0.0
        %932 = vmatpush1.msra.mxu0 0.0
        %933 = vmatprep.subr.mxu0 0.0
        %934 = vmatpush1.msra.mxu0 0.0
        %935 = vmatprep.subr.mxu0 0.0
        %936 = vmatpush1.msra.mxu0 0.0
        %937 = vmatprep.subr.mxu0 0.0
        %938 = vmatpush1.msra.mxu0 0.0
        %939 = vmatprep.mubr.f32.mxu0 0.0
        %940 = vmatmul.mubr.f32.gmra.mrb[0].mxu0 %v873
        %v941 = vpop.f32.mrb[0].mxu0
        %v942 = vadd.f32 0.0, %v941
        %v943 = vpop.f32.mrb[0].mxu0
        %944 = vdwg.mxu0
        %v945 = vsel %vm620, %v942, -inf
        %946 = vmax.xlane.f32.xlu0 %v945
        %v947 = vpop.xlane.xlu0 %946
        %v948 = vsub.f32 %v942, %v947
        %v949 = vmul.f32 %v948, 1.442695
        %v950 = vpow.pop %v949
        %v951 = vsel %vm620, %v950, 0.0
        %952 = vadd.xlane.f32.xlu0 %v951
        %v953 = vpop.xlane.xlu0 %952
        %v954 = vrcp.pop %v953
        %v955 = vmul.f32 %v950, %v954
        %956 = vrot.lane.b32.xlu0 %v544, 112
        %v957 = vpop.permute.xlu0 %956
        %958 = vrot.lane.b32.xlu0 %v545, 112
        %v959 = vpop.permute.xlu0 %958
        %v963 = vsel %vm620, %v955, 0
        %965 = vmatprep.subr.mxu0 0.0
        %966 = vmatpush1.msra.mxu0 %v957
        %967 = vmatprep.subr.mxu0 0.0
        %968 = vmatpush1.msra.mxu0 %v959
        %969 = vmatprep.subr.mxu0 0.0
        %970 = vmatpush1.msra.mxu0 0.0
        %971 = vmatprep.subr.mxu0 0.0
        %972 = vmatpush1.msra.mxu0 0.0
        %973 = vmatprep.subr.mxu0 0.0
        %974 = vmatpush1.msra.mxu0 0.0
        %975 = vmatprep.subr.mxu0 0.0
        %976 = vmatpush1.msra.mxu0 0.0
        %977 = vmatprep.subr.mxu0 0.0
        %978 = vmatpush1.msra.mxu0 0.0
        %979 = vmatprep.subr.mxu0 0.0
        %980 = vmatpush1.msra.mxu0 0.0
        %981 = vmatprep.subr.mxu0 0.0
        %982 = vmatpush1.msra.mxu0 0.0
        %983 = vmatprep.subr.mxu0 0.0
        %984 = vmatpush1.msra.mxu0 0.0
        %985 = vmatprep.subr.mxu0 0.0
        %986 = vmatpush1.msra.mxu0 0.0
        %987 = vmatprep.subr.mxu0 0.0
        %988 = vmatpush1.msra.mxu0 0.0
        %989 = vmatprep.subr.mxu0 0.0
        %990 = vmatpush1.msra.mxu0 0.0
        %991 = vmatprep.subr.mxu0 0.0
        %992 = vmatpush1.msra.mxu0 0.0
        %993 = vmatprep.subr.mxu0 0.0
        %994 = vmatpush1.msra.mxu0 0.0
        %995 = vmatprep.subr.mxu0 0.0
        %996 = vmatpush1.msra.mxu0 0.0
        %997 = vmatprep.subr.mxu0 0.0
        %998 = vmatpush1.msra.mxu0 0.0
        %999 = vmatprep.subr.mxu0 0.0
        %1000 = vmatpush1.msra.mxu0 0.0
        %1001 = vmatprep.subr.mxu0 0.0
        %1002 = vmatpush1.msra.mxu0 0.0
        %1003 = vmatprep.subr.mxu0 0.0
        %1004 = vmatpush1.msra.mxu0 0.0
        %1005 = vmatprep.subr.mxu0 0.0
        %1006 = vmatpush1.msra.mxu0 0.0
        %1007 = vmatprep.subr.mxu0 0.0
        %1008 = vmatpush1.msra.mxu0 0.0
        %1009 = vmatprep.subr.mxu0 0.0
        %1010 = vmatpush1.msra.mxu0 0.0
        %1011 = vmatprep.subr.mxu0 0.0
        %1012 = vmatpush1.msra.mxu0 0.0
        %1013 = vmatprep.subr.mxu0 0.0
        %1014 = vmatpush1.msra.mxu0 0.0
        %1015 = vmatprep.subr.mxu0 0.0
        %1016 = vmatpush1.msra.mxu0 0.0
        %1017 = vmatprep.subr.mxu0 0.0
        %1018 = vmatpush1.msra.mxu0 0.0
        %1019 = vmatprep.subr.mxu0 0.0
        %1020 = vmatpush1.msra.mxu0 0.0
        %1021 = vmatprep.subr.mxu0 0.0
        %1022 = vmatpush1.msra.mxu0 0.0
        %1023 = vmatprep.subr.mxu0 0.0
        %1024 = vmatpush1.msra.mxu0 0.0
        %1025 = vmatprep.subr.mxu0 0.0
        %1026 = vmatpush1.msra.mxu0 0.0
        %1027 = vmatprep.subr.mxu0 0.0
        %1028 = vmatpush1.msra.mxu0 0.0
        %1029 = vmatprep.mubr.f32.mxu0 0.0
        %1030 = vmatmul.mubr.f32.gmra.mrb[0].mxu0 %v963
        %v1031 = vpop.f32.mrb[0].mxu0
        %v1032 = vadd.f32 0.0, %v1031
        %v1033 = vpop.f32.mrb[0].mxu0
        %1034 = vdwg.mxu0
        %1035 = vrot.lane.b32.xlu0 %v537, 104
        %v1036 = vpop.permute.xlu0 %1035
        %v1037 = vsel %vm546, %v1036, 0
        %1039 = vmatprep.subr.mxu0 0.0
        %1040 = vmatpush1.msra.mxu0 %v543
        %1041 = vmatprep.subr.mxu0 0.0
        %1042 = vmatpush1.msra.mxu0 0.0
        %1043 = vmatprep.subr.mxu0 0.0
        %1044 = vmatpush1.msra.mxu0 0.0
        %1045 = vmatprep.subr.mxu0 0.0
        %1046 = vmatpush1.msra.mxu0 0.0
        %1047 = vmatprep.subr.mxu0 0.0
        %1048 = vmatpush1.msra.mxu0 0.0
        %1049 = vmatprep.subr.mxu0 0.0
        %1050 = vmatpush1.msra.mxu0 0.0
        %1051 = vmatprep.subr.mxu0 0.0
        %1052 = vmatpush1.msra.mxu0 0.0
        %1053 = vmatprep.subr.mxu0 0.0
        %1054 = vmatpush1.msra.mxu0 0.0
        %1055 = vmatprep.subr.mxu0 0.0
        %1056 = vmatpush1.msra.mxu0 0.0
        %1057 = vmatprep.subr.mxu0 0.0
        %1058 = vmatpush1.msra.mxu0 0.0
        %1059 = vmatprep.subr.mxu0 0.0
        %1060 = vmatpush1.msra.mxu0 0.0
        %1061 = vmatprep.subr.mxu0 0.0
        %1062 = vmatpush1.msra.mxu0 0.0
        %1063 = vmatprep.subr.mxu0 0.0
        %1064 = vmatpush1.msra.mxu0 0.0
        %1065 = vmatprep.subr.mxu0 0.0
        %1066 = vmatpush1.msra.mxu0 0.0
        %1067 = vmatprep.subr.mxu0 0.0
        %1068 = vmatpush1.msra.mxu0 0.0
        %1069 = vmatprep.subr.mxu0 0.0
        %1070 = vmatpush1.msra.mxu0 0.0
        %1071 = vmatprep.subr.mxu0 0.0
        %1072 = vmatpush1.msra.mxu0 0.0
        %1073 = vmatprep.subr.mxu0 0.0
        %1074 = vmatpush1.msra.mxu0 0.0
        %1075 = vmatprep.subr.mxu0 0.0
        %1076 = vmatpush1.msra.mxu0 0.0
        %1077 = vmatprep.subr.mxu0 0.0
        %1078 = vmatpush1.msra.mxu0 0.0
        %1079 = vmatprep.subr.mxu0 0.0
        %1080 = vmatpush1.msra.mxu0 0.0
        %1081 = vmatprep.subr.mxu0 0.0
        %1082 = vmatpush1.msra.mxu0 0.0
        %1083 = vmatprep.subr.mxu0 0.0
        %1084 = vmatpush1.msra.mxu0 0.0
        %1085 = vmatprep.subr.mxu0 0.0
        %1086 = vmatpush1.msra.mxu0 0.0
        %1087 = vmatprep.subr.mxu0 0.0
        %1088 = vmatpush1.msra.mxu0 0.0
        %1089 = vmatprep.subr.mxu0 0.0
        %1090 = vmatpush1.msra.mxu0 0.0
        %1091 = vmatprep.subr.mxu0 0.0
        %1092 = vmatpush1.msra.mxu0 0.0
        %1093 = vmatprep.subr.mxu0 0.0
        %1094 = vmatpush1.msra.mxu0 0.0
        %1095 = vmatprep.subr.mxu0 0.0
        %1096 = vmatpush1.msra.mxu0 0.0
        %1097 = vmatprep.subr.mxu0 0.0
        %1098 = vmatpush1.msra.mxu0 0.0
        %1099 = vmatprep.subr.mxu0 0.0
        %1100 = vmatpush1.msra.mxu0 0.0
        %1101 = vmatprep.subr.mxu0 0.0
        %1102 = vmatpush1.msra.mxu0 0.0
        %1103 = vmatprep.mubr.f32.mxu0 0.0
        %1104 = vmatmul.mubr.f32.gmra.mrb[0].mxu0 %v1037
        %v1105 = vpop.f32.mrb[0].mxu0
        %v1106 = vadd.f32 0.0, %v1105
        %v1107 = vpop.f32.mrb[0].mxu0
        %1108 = vdwg.mxu0
        %v1109 = vsel %vm620, %v1106, -inf
        %1110 = vmax.xlane.f32.xlu0 %v1109
        %v1111 = vpop.xlane.xlu0 %1110
        %v1112 = vsub.f32 %v1106, %v1111
        %v1113 = vmul.f32 %v1112, 1.442695
        %v1114 = vpow.pop %v1113
        %v1115 = vsel %vm620, %v1114, 0.0
        %1116 = vadd.xlane.f32.xlu0 %v1115
        %v1117 = vpop.xlane.xlu0 %1116
        %v1118 = vrcp.pop %v1117
        %v1119 = vmul.f32 %v1114, %v1118
        %1120 = vrot.lane.b32.xlu0 %v544, 104
        %v1121 = vpop.permute.xlu0 %1120
        %1122 = vrot.lane.b32.xlu0 %v545, 104
        %v1123 = vpop.permute.xlu0 %1122
        %v1127 = vsel %vm620, %v1119, 0
        %1129 = vmatprep.subr.mxu0 0.0
        %1130 = vmatpush1.msra.mxu0 %v1121
        %1131 = vmatprep.subr.mxu0 0.0
        %1132 = vmatpush1.msra.mxu0 %v1123
        %1133 = vmatprep.subr.mxu0 0.0
        %1134 = vmatpush1.msra.mxu0 0.0
        %1135 = vmatprep.subr.mxu0 0.0
        %1136 = vmatpush1.msra.mxu0 0.0
        %1137 = vmatprep.subr.mxu0 0.0
        %1138 = vmatpush1.msra.mxu0 0.0
        %1139 = vmatprep.subr.mxu0 0.0
        %1140 = vmatpush1.msra.mxu0 0.0
        %1141 = vmatprep.subr.mxu0 0.0
        %1142 = vmatpush1.msra.mxu0 0.0
        %1143 = vmatprep.subr.mxu0 0.0
        %1144 = vmatpush1.msra.mxu0 0.0
        %1145 = vmatprep.subr.mxu0 0.0
        %1146 = vmatpush1.msra.mxu0 0.0
        %1147 = vmatprep.subr.mxu0 0.0
        %1148 = vmatpush1.msra.mxu0 0.0
        %1149 = vmatprep.subr.mxu0 0.0
        %1150 = vmatpush1.msra.mxu0 0.0
        %1151 = vmatprep.subr.mxu0 0.0
        %1152 = vmatpush1.msra.mxu0 0.0
        %1153 = vmatprep.subr.mxu0 0.0
        %1154 = vmatpush1.msra.mxu0 0.0
        %1155 = vmatprep.subr.mxu0 0.0
        %1156 = vmatpush1.msra.mxu0 0.0
        %1157 = vmatprep.subr.mxu0 0.0
        %1158 = vmatpush1.msra.mxu0 0.0
        %1159 = vmatprep.subr.mxu0 0.0
        %1160 = vmatpush1.msra.mxu0 0.0
        %1161 = vmatprep.subr.mxu0 0.0
        %1162 = vmatpush1.msra.mxu0 0.0
        %1163 = vmatprep.subr.mxu0 0.0
        %1164 = vmatpush1.msra.mxu0 0.0
        %1165 = vmatprep.subr.mxu0 0.0
        %1166 = vmatpush1.msra.mxu0 0.0
        %1167 = vmatprep.subr.mxu0 0.0
        %1168 = vmatpush1.msra.mxu0 0.0
        %1169 = vmatprep.subr.mxu0 0.0
        %1170 = vmatpush1.msra.mxu0 0.0
        %1171 = vmatprep.subr.mxu0 0.0
        %1172 = vmatpush1.msra.mxu0 0.0
        %1173 = vmatprep.subr.mxu0 0.0
        %1174 = vmatpush1.msra.mxu0 0.0
        %1175 = vmatprep.subr.mxu0 0.0
        %1176 = vmatpush1.msra.mxu0 0.0
        %1177 = vmatprep.subr.mxu0 0.0
        %1178 = vmatpush1.msra.mxu0 0.0
        %1179 = vmatprep.subr.mxu0 0.0
        %1180 = vmatpush1.msra.mxu0 0.0
        %1181 = vmatprep.subr.mxu0 0.0
        %1182 = vmatpush1.msra.mxu0 0.0
        %1183 = vmatprep.subr.mxu0 0.0
        %1184 = vmatpush1.msra.mxu0 0.0
        %1185 = vmatprep.subr.mxu0 0.0
        %1186 = vmatpush1.msra.mxu0 0.0
        %1187 = vmatprep.subr.mxu0 0.0
        %1188 = vmatpush1.msra.mxu0 0.0
        %1189 = vmatprep.subr.mxu0 0.0
        %1190 = vmatpush1.msra.mxu0 0.0
        %1191 = vmatprep.subr.mxu0 0.0
        %1192 = vmatpush1.msra.mxu0 0.0
        %1193 = vmatprep.mubr.f32.mxu0 0.0
        %1194 = vmatmul.mubr.f32.gmra.mrb[0].mxu0 %v1127
        %v1195 = vpop.f32.mrb[0].mxu0
        %v1196 = vadd.f32 0.0, %v1195
        %v1197 = vpop.f32.mrb[0].mxu0
        %1198 = vdwg.mxu0
        %1200 = vrot.lane.b32.xlu0 %v868, 8
        %v1201 = vpop.permute.xlu0 %1200
        %1204 = vrot.lane.b32.xlu0 %v1032, 16
        %v1205 = vpop.permute.xlu0 %1204
        %1208 = vrot.lane.b32.xlu0 %v1196, 24
        %v1209 = vpop.permute.xlu0 %1208
        %v1211 = vsel %vm546, %v702, %v1201
        %v1212 = vsel %vm620, %v1211, %v1205
        %vm1213 = vcmask 195584
        %v1214 = vsel %vm1213, %v1212, %v1209
        %v1215 = vld [vmem:[%s5] sm:$0xff]
        %v1216 = vld [vmem:[%s5 + $0x8] sm:$0xff]
        %v1217 = vld [vmem:[%s5 + $0x10] sm:$0xff]
        %v1218 = vld [vmem:[%s5 + $0x18] sm:$0xff]
        %v1219 = vlaneseq
        %v1220 = vshrl.u32 %v1219, 7
        %v1221 = vsub.s32 0, %v1220
        %v1222 = vrot.slane %v449, %v1221
        %v1224 = vsel %vm466, %v1214, 0
        %1226 = vmatprep.subr.mxu0 0.0
        %1227 = vmatpush1.msra.mxu0 %v1215
        %1228 = vmatprep.subr.mxu0 0.0
        %1229 = vmatpush1.msra.mxu0 %v1216
        %1230 = vmatprep.subr.mxu0 0.0
        %1231 = vmatpush1.msra.mxu0 %v1217
        %1232 = vmatprep.subr.mxu0 0.0
        %1233 = vmatpush1.msra.mxu0 %v1218
        %1234 = vmatprep.subr.mxu0 0.0
        %1235 = vmatpush1.msra.mxu0 0.0
        %1236 = vmatprep.subr.mxu0 0.0
        %1237 = vmatpush1.msra.mxu0 0.0
        %1238 = vmatprep.subr.mxu0 0.0
        %1239 = vmatpush1.msra.mxu0 0.0
        %1240 = vmatprep.subr.mxu0 0.0
        %1241 = vmatpush1.msra.mxu0 0.0
        %1242 = vmatprep.subr.mxu0 0.0
        %1243 = vmatpush1.msra.mxu0 0.0
        %1244 = vmatprep.subr.mxu0 0.0
        %1245 = vmatpush1.msra.mxu0 0.0
        %1246 = vmatprep.subr.mxu0 0.0
        %1247 = vmatpush1.msra.mxu0 0.0
        %1248 = vmatprep.subr.mxu0 0.0
        %1249 = vmatpush1.msra.mxu0 0.0
        %1250 = vmatprep.subr.mxu0 0.0
        %1251 = vmatpush1.msra.mxu0 0.0
        %1252 = vmatprep.subr.mxu0 0.0
        %1253 = vmatpush1.msra.mxu0 0.0
        %1254 = vmatprep.subr.mxu0 0.0
        %1255 = vmatpush1.msra.mxu0 0.0
        %1256 = vmatprep.subr.mxu0 0.0
        %1257 = vmatpush1.msra.mxu0 0.0
        %1258 = vmatprep.subr.mxu0 0.0
        %1259 = vmatpush1.msra.mxu0 0.0
        %1260 = vmatprep.subr.mxu0 0.0
        %1261 = vmatpush1.msra.mxu0 0.0
        %1262 = vmatprep.subr.mxu0 0.0
        %1263 = vmatpush1.msra.mxu0 0.0
        %1264 = vmatprep.subr.mxu0 0.0
        %1265 = vmatpush1.msra.mxu0 0.0
        %1266 = vmatprep.subr.mxu0 0.0
        %1267 = vmatpush1.msra.mxu0 0.0
        %1268 = vmatprep.subr.mxu0 0.0
        %1269 = vmatpush1.msra.mxu0 0.0
        %1270 = vmatprep.subr.mxu0 0.0
        %1271 = vmatpush1.msra.mxu0 0.0
        %1272 = vmatprep.subr.mxu0 0.0
        %1273 = vmatpush1.msra.mxu0 0.0
        %1274 = vmatprep.subr.mxu0 0.0
        %1275 = vmatpush1.msra.mxu0 0.0
        %1276 = vmatprep.subr.mxu0 0.0
        %1277 = vmatpush1.msra.mxu0 0.0
        %1278 = vmatprep.subr.mxu0 0.0
        %1279 = vmatpush1.msra.mxu0 0.0
        %1280 = vmatprep.subr.mxu0 0.0
        %1281 = vmatpush1.msra.mxu0 0.0
        %1282 = vmatprep.subr.mxu0 0.0
        %1283 = vmatpush1.msra.mxu0 0.0
        %1284 = vmatprep.subr.mxu0 0.0
        %1285 = vmatpush1.msra.mxu0 0.0
        %1286 = vmatprep.subr.mxu0 0.0
        %1287 = vmatpush1.msra.mxu0 0.0
        %1288 = vmatprep.subr.mxu0 0.0
        %1289 = vmatpush1.msra.mxu0 0.0
        %1290 = vmatprep.mubr.f32.mxu0 0.0
        %1291 = vmatmul.mubr.f32.gmra.mrb[0].mxu0 %v1224
        %v1292 = vpop.f32.mrb[0].mxu0
        %v1293 = vadd.f32 %v1222, %v1292
        %v1294 = vpop.f32.mrb[0].mxu0
        %1295 = vdwg.mxu0
        %v1296 = vadd.f32 %v455, %v1293
        %v1297 = vsel %vm466, %v1296, 0.0
        %1298 = vadd.xlane.f32.xlu0 %v1297
        %v1299 = vpop.xlane.xlu0 %1298
        %v1300 = vrcp.pop 32.0
        %v1301 = vmul.f32 %v1299, %v1300
        %v1302 = vsub.f32 %v1296, %v1301
        %v1303 = vmul.f32 %v1302, %v1302
        %v1304 = vsel %vm466, %v1303, 0.0
        %1305 = vadd.xlane.f32.xlu0 %v1304
        %v1306 = vpop.xlane.xlu0 %1305
        %v1307 = vmul.f32 %v1306, %v1300
        %v1308 = vadd.f32 %v1307, 1e-05
        %v1309 = vrsqrt.pop %v1308
        %v1310 = vmul.f32 %v1302, %v1309
        %v1311 = vlaneseq
        %v1312 = vshrl.u32 %v1311, 7
        %v1313 = vsub.s32 0, %v1312
        %v1314 = vrot.slane %v450, %v1313
        %v1315 = vmul.f32 %v1310, %v1314
        %v1316 = vlaneseq
        %v1317 = vshrl.u32 %v1316, 7
        %v1318 = vsub.s32 0, %v1317
        %v1319 = vrot.slane %v451, %v1318
        %v1320 = vadd.f32 %v1315, %v1319
        %v1321 = vld [vmem:[%s6] sm:$0xff]
        %v1322 = vld [vmem:[%s6 + $0x8] sm:$0xff]
        %v1323 = vld [vmem:[%s6 + $0x10] sm:$0xff]
        %v1324 = vld [vmem:[%s6 + $0x18] sm:$0xff]
        %v1325 = vld [vmem:[%s7] sm:$0x1]
        %v1327 = vlaneseq
        %v1328 = vshrl.u32 %v1327, 7
        %v1329 = vsub.s32 0, %v1328
        %v1330 = vrot.slane %v1325, %v1329
        %v1333 = vsel %vm466, %v1320, 0
        %1335 = vmatprep.subr.mxu0 0.0
        %1336 = vmatpush1.msra.mxu0 %v1321
        %1337 = vmatprep.subr.mxu0 0.0
        %1338 = vmatpush1.msra.mxu0 %v1322
        %1339 = vmatprep.subr.mxu0 0.0
        %1340 = vmatpush1.msra.mxu0 %v1323
        %1341 = vmatprep.subr.mxu0 0.0
        %1342 = vmatpush1.msra.mxu0 %v1324
        %1343 = vmatprep.subr.mxu0 0.0
        %1344 = vmatpush1.msra.mxu0 0.0
        %1345 = vmatprep.subr.mxu0 0.0
        %1346 = vmatpush1.msra.mxu0 0.0
        %1347 = vmatprep.subr.mxu0 0.0
        %1348 = vmatpush1.msra.mxu0 0.0
        %1349 = vmatprep.subr.mxu0 0.0
        %1350 = vmatpush1.msra.mxu0 0.0
        %1351 = vmatprep.subr.mxu0 0.0
        %1352 = vmatpush1.msra.mxu0 0.0
        %1353 = vmatprep.subr.mxu0 0.0
        %1354 = vmatpush1.msra.mxu0 0.0
        %1355 = vmatprep.subr.mxu0 0.0
        %1356 = vmatpush1.msra.mxu0 0.0
        %1357 = vmatprep.subr.mxu0 0.0
        %1358 = vmatpush1.msra.mxu0 0.0
        %1359 = vmatprep.subr.mxu0 0.0
        %1360 = vmatpush1.msra.mxu0 0.0
        %1361 = vmatprep.subr.mxu0 0.0
        %1362 = vmatpush1.msra.mxu0 0.0
        %1363 = vmatprep.subr.mxu0 0.0
        %1364 = vmatpush1.msra.mxu0 0.0
        %1365 = vmatprep.subr.mxu0 0.0
        %1366 = vmatpush1.msra.mxu0 0.0
        %1367 = vmatprep.subr.mxu0 0.0
        %1368 = vmatpush1.msra.mxu0 0.0
        %1369 = vmatprep.subr.mxu0 0.0
        %1370 = vmatpush1.msra.mxu0 0.0
        %1371 = vmatprep.subr.mxu0 0.0
        %1372 = vmatpush1.msra.mxu0 0.0
        %1373 = vmatprep.subr.mxu0 0.0
        %1374 = vmatpush1.msra.mxu0 0.0
        %1375 = vmatprep.subr.mxu0 0.0
        %1376 = vmatpush1.msra.mxu0 0.0
        %1377 = vmatprep.subr.mxu0 0.0
        %1378 = vmatpush1.msra.mxu0 0.0
        %1379 = vmatprep.subr.mxu0 0.0
        %1380 = vmatpush1.msra.mxu0 0.0
        %1381 = vmatprep.subr.mxu0 0.0
        %1382 = vmatpush1.msra.mxu0 0.0
        %1383 = vmatprep.subr.mxu0 0.0
        %1384 = vmatpush1.msra.mxu0 0.0
        %1385 = vmatprep.subr.mxu0 0.0
        %1386 = vmatpush1.msra.mxu0 0.0
        %1387 = vmatprep.subr.mxu0 0.0
        %1388 = vmatpush1.msra.mxu0 0.0
        %1389 = vmatprep.subr.mxu0 0.0
        %1390 = vmatpush1.msra.mxu0 0.0
        %1391 = vmatprep.subr.mxu0 0.0
        %1392 = vmatpush1.msra.mxu0 0.0
        %1393 = vmatprep.subr.mxu0 0.0
        %1394 = vmatpush1.msra.mxu0 0.0
        %1395 = vmatprep.subr.mxu0 0.0
        %1396 = vmatpush1.msra.mxu0 0.0
        %1397 = vmatprep.subr.mxu0 0.0
        %1398 = vmatpush1.msra.mxu0 0.0
        %1399 = vmatprep.mubr.f32.mxu0 0.0
        %1400 = vmatmul.mubr.f32.gmra.mrb[0].mxu0 %v1333
        %v1401 = vpop.f32.mrb[0].mxu0
        %v1402 = vadd.f32 %v1330, %v1401
        %v1403 = vpop.f32.mrb[0].mxu0
        %1404 = vdwg.mxu0
        %v1405 = vmax.f32 %v1402, 0.0
        %v1406 = vld [vmem:[%s8] sm:$0xff]
        %v1407 = vld [vmem:[%s8 + $0x8] sm:$0xff]
        %v1408 = vld [vmem:[%s8 + $0x10] sm:$0xff]
        %v1409 = vld [vmem:[%s8 + $0x18] sm:$0xff]
        %v1410 = vld [vmem:[%s8 + $0x20] sm:$0xff]
        %v1411 = vld [vmem:[%s8 + $0x28] sm:$0xff]
        %v1412 = vld [vmem:[%s8 + $0x30] sm:$0xff]
        %v1413 = vld [vmem:[%s8 + $0x38] sm:$0xff]
        %v1414 = vlaneseq
        %v1415 = vshrl.u32 %v1414, 7
        %v1416 = vsub.s32 0, %v1415
        %v1417 = vrot.slane %v452, %v1416
        %vm1418 = vcmask 523264
        %v1420 = vsel %vm1418, %v1405, 0
        %1422 = vmatprep.subr.mxu0 0.0
        %1423 = vmatpush1.msra.mxu0 %v1406
        %1424 = vmatprep.subr.mxu0 0.0
        %1425 = vmatpush1.msra.mxu0 %v1407
        %1426 = vmatprep.subr.mxu0 0.0
        %1427 = vmatpush1.msra.mxu0 %v1408
        %1428 = vmatprep.subr.mxu0 0.0
        %1429 = vmatpush1.msra.mxu0 %v1409
        %1430 = vmatprep.subr.mxu0 0.0
        %1431 = vmatpush1.msra.mxu0 %v1410
        %1432 = vmatprep.subr.mxu0 0.0
        %1433 = vmatpush1.msra.mxu0 %v1411
        %1434 = vmatprep.subr.mxu0 0.0
        %1435 = vmatpush1.msra.mxu0 %v1412
        %1436 = vmatprep.subr.mxu0 0.0
        %1437 = vmatpush1.msra.mxu0 %v1413
        %1438 = vmatprep.subr.mxu0 0.0
        %1439 = vmatpush1.msra.mxu0 0.0
        %1440 = vmatprep.subr.mxu0 0.0
        %1441 = vmatpush1.msra.mxu0 0.0
        %1442 = vmatprep.subr.mxu0 0.0
        %1443 = vmatpush1.msra.mxu0 0.0
        %1444 = vmatprep.subr.mxu0 0.0
        %1445 = vmatpush1.msra.mxu0 0.0
        %1446 = vmatprep.subr.mxu0 0.0
        %1447 = vmatpush1.msra.mxu0 0.0
        %1448 = vmatprep.subr.mxu0 0.0
        %1449 = vmatpush1.msra.mxu0 0.0
        %1450 = vmatprep.subr.mxu0 0.0
        %1451 = vmatpush1.msra.mxu0 0.0
        %1452 = vmatprep.subr.mxu0 0.0
        %1453 = vmatpush1.msra.mxu0 0.0
        %1454 = vmatprep.subr.mxu0 0.0
        %1455 = vmatpush1.msra.mxu0 0.0
        %1456 = vmatprep.subr.mxu0 0.0
        %1457 = vmatpush1.msra.mxu0 0.0
        %1458 = vmatprep.subr.mxu0 0.0
        %1459 = vmatpush1.msra.mxu0 0.0
        %1460 = vmatprep.subr.mxu0 0.0
        %1461 = vmatpush1.msra.mxu0 0.0
        %1462 = vmatprep.subr.mxu0 0.0
        %1463 = vmatpush1.msra.mxu0 0.0
        %1464 = vmatprep.subr.mxu0 0.0
        %1465 = vmatpush1.msra.mxu0 0.0
        %1466 = vmatprep.subr.mxu0 0.0
        %1467 = vmatpush1.msra.mxu0 0.0
        %1468 = vmatprep.subr.mxu0 0.0
        %1469 = vmatpush1.msra.mxu0 0.0
        %1470 = vmatprep.subr.mxu0 0.0
        %1471 = vmatpush1.msra.mxu0 0.0
        %1472 = vmatprep.subr.mxu0 0.0
        %1473 = vmatpush1.msra.mxu0 0.0
        %1474 = vmatprep.subr.mxu0 0.0
        %1475 = vmatpush1.msra.mxu0 0.0
        %1476 = vmatprep.subr.mxu0 0.0
        %1477 = vmatpush1.msra.mxu0 0.0
        %1478 = vmatprep.subr.mxu0 0.0
        %1479 = vmatpush1.msra.mxu0 0.0
        %1480 = vmatprep.subr.mxu0 0.0
        %1481 = vmatpush1.msra.mxu0 0.0
        %1482 = vmatprep.subr.mxu0 0.0
        %1483 = vmatpush1.msra.mxu0 0.0
        %1484 = vmatprep.subr.mxu0 0.0
        %1485 = vmatpush1.msra.mxu0 0.0
        %1486 = vmatprep.mubr.f32.mxu0 0.0
        %1487 = vmatmul.mubr.f32.gmra.mrb[0].mxu0 %v1420
        %v1488 = vpop.f32.mrb[0].mxu0
        %v1489 = vadd.f32 %v1417, %v1488
        %v1490 = vpop.f32.mrb[0].mxu0
        %1491 = vdwg.mxu0
        %v1492 = vadd.f32 %v1320, %v1489
        %v1493 = vsel %vm466, %v1492, 0.0
        %1494 = vadd.xlane.f32.xlu0 %v1493
        %v1495 = vpop.xlane.xlu0 %1494
        %v1496 = vmul.f32 %v1495, %v1300
        %v1497 = vsub.f32 %v1492, %v1496
        %v1498 = vmul.f32 %v1497, %v1497
        %v1499 = vsel %vm466, %v1498, 0.0
        %1500 = vadd.xlane.f32.xlu0 %v1499
        %v1501 = vpop.xlane.xlu0 %1500
        %v1502 = vmul.f32 %v1501, %v1300
        %v1503 = vadd.f32 %v1502, 1e-05
        %v1504 = vrsqrt.pop %v1503
        %v1505 = vmul.f32 %v1497, %v1504
        %v1506 = vlaneseq
        %v1507 = vshrl.u32 %v1506, 7
        %v1508 = vsub.s32 0, %v1507
        %v1509 = vrot.slane %v453, %v1508
        %v1510 = vmul.f32 %v1505, %v1509
        %v1511 = vlaneseq
        %v1512 = vshrl.u32 %v1511, 7
        %v1513 = vsub.s32 0, %v1512
        %v1514 = vrot.slane %v454, %v1513
        %v1515 = vadd.f32 %v1510, %v1514
        %1516 = vst.msk [vmem:[%s423] sm:$0xff] %vm466, %v1515
        %s1517 = sand.u32 %s280, 1
        %s1518 = scalar_lea.sflag [#allocation3], %s1517
        %s1519 = sand.u32 %s280, 1
        %s1520 = smul.addr %s1519, 8
        %s1521 = scalar_lea.vmem [#allocation2], %s1520
        // Predicated region
        $region61: #{tpu_custom_call.1} parent=59 // pred_check
          %p1522 = pneg %p290
        $region62: #{tpu_custom_call.1} parent=59 // pred_check_branch
          %1524 = sbr.rel (%p1522) target = $region64
        $region63: #{tpu_custom_call.1} parent=59 // pred_region
          %s1526 = ssub.s32 128, 128
          %1527 = vsyncadd %s1518, %s1526
          %s1528 = sadd.s32 %s29, %s28
          %s1529 = smul.addr %s1528, 128
          %s1530 = scalar_lea.hbm %s10, %s1529
          %s1532 = sshll.u32 %s1521, 4
          %s1533 = int_to_ptr.vmem [resolvable:$true] %s1532
          %1535 = dma.vmem_to_hbm [thread:$0]  %s1533, 128, %s1530, %s1518
        $region64: #{tpu_custom_call.1} parent=59 // pred_fallthru
          _
      $region60: #{tpu_custom_call.1} parent=5 // pred_fallthru
        _
      %p1536 = scmp.le.s32.totalorder 2, %s19
      // Predicated region
      $region65: #{tpu_custom_call.1} parent=5 // pred_check
        %p1537 = pneg %p1536
      $region66: #{tpu_custom_call.1} parent=5 // pred_check_branch
        %1539 = sbr.rel (%p1537) target = $region68
      $region67: #{tpu_custom_call.1} parent=5 // pred_region
        %s1540 = ssub.s32 %s19, 2
        // Predicated region
        $region69: #{tpu_custom_call.1} parent=67 // pred_check
          %p1541 = pneg %p296
        $region70: #{tpu_custom_call.1} parent=67 // pred_check_branch
          %1543 = sbr.rel (%p1541) target = $region72
        $region71: #{tpu_custom_call.1} parent=67 // pred_region
          %s1544 = sand.u32 %s281, 1
          %s1545 = scalar_lea.sflag [#allocation3], %s1544
          %s1546 = sand.u32 %s281, 1
          %s1547 = smul.addr %s1546, 8
          %s1548 = scalar_lea.vmem [#allocation2], %s1547
          %1549 = dma.done %s1545, 128
        $region72: #{tpu_custom_call.1} parent=67 // pred_fallthru
          _
      $region68: #{tpu_custom_call.1} parent=5 // pred_fallthru
        _
    $region6: #{tpu_custom_call.1} parent=1 // loop_footer
      %s23 = sadd.s32 1, %s19
    $region7: #{tpu_custom_call.1} parent=1 // loop_footer_branch
      %18 = sbr.rel target = $region3
    $region8: #{tpu_custom_call.1} parent=1 // loop_exit
      _
    %1550 = vsyncpa [#allocation3], 1
    %s1551 = scalar_lea.sflag [#allocation3], 1
    %1552 = vsyncpa %s1551, 1

</llo_original>
